<compile_context>
chip_gen: v7x
topology: tpu7x:2x2x1
jax: 0.10.0
libtpu: 0.0.40
codegen_flags: <defaults>
</compile_context>

<pallas_src>
import jax
import jax.numpy as jnp
from jax.experimental import pallas as pl
from jax.experimental.pallas import tpu as pltpu

ENC_DIM = 128      # encoder output features (classifier head expects 128)
MID_DIM = 64       # classifier hidden width
NUM_CLASSES = 10   # logits
LANE = 128         # TPU lane width -> lane-dense padded widths
SUBLANE = 16       # bf16 sublane packing granule (also fine for f32 blocks)
K_SINGLE_MAX = 2048  # up to this chw, do the encoder matmul in a single K step


def _round_up(n, m):
    return (n + m - 1) // m * m


def _pick_tile_b(b_pad, requested):
    """Largest multiple of 16 <= requested that divides b_pad; prefer >=2 batch
    tiles when there is enough batch so v7x's two TensorCores both get work."""
    cap = min(requested, b_pad)
    if b_pad >= 2 * SUBLANE:
        cap = min(cap, b_pad // 2)
    cap = max(SUBLANE, (cap // SUBLANE) * SUBLANE)
    t = cap
    while t > SUBLANE and b_pad % t != 0:
        t -= SUBLANE
    return t


def _pick_tk(chw):
    """Return (chw_pad, tk). Single K step for small chw; otherwise tile K so the
    x tile and encoder-weight tile stay small in VMEM."""
    if chw <= K_SINGLE_MAX:
        return chw, chw            # full-extent block: no 128-divisibility required
    chw_pad = _round_up(chw, LANE)
    tk = 1024
    while tk > LANE and chw_pad % tk != 0:
        tk -= LANE
    return chw_pad, tk


def _mlp_kernel(x_ref, we_ref, be_ref, w1_ref, b1_ref, w2_ref, b2_ref, o_ref, acc_ref):
    k = pl.program_id(1)

    @pl.when(k == 0)
    def _():
        acc_ref[...] = jnp.zeros_like(acc_ref)

    # Encoder matmul slice: cast the f32 x tile to bf16 in-kernel (VPU has slack),
    # MXU matmul with f32 accumulation into the resident scratch accumulator.
    acc_ref[...] += jnp.dot(x_ref[...].astype(jnp.bfloat16), we_ref[...],
                            preferred_element_type=jnp.float32)

    @pl.when(k == pl.num_programs(1) - 1)
    def _():
        # f32 epilogue (bias + ReLU); stays f32 for the v5e VPU.
        h = jnp.maximum(acc_ref[...] + be_ref[...], 0.0)
        # Classifier Linear(128, 64) + ReLU (64 padded to 128 lanes; pad cols stay 0).
        h = jnp.dot(h.astype(jnp.bfloat16), w1_ref[...],
                    preferred_element_type=jnp.float32)
        h = jnp.maximum(h + b1_ref[...], 0.0)
        # Classifier Linear(64, 10) (10 padded to 128 lanes); lane-dense bf16 store.
        out = jnp.dot(h.astype(jnp.bfloat16), w2_ref[...],
                      preferred_element_type=jnp.float32)
        o_ref[...] = (out + b2_ref[...]).astype(o_ref.dtype)


def gesture_classifier_forward(x_nchw, params, *, tile_b=512):
    """x_nchw: float32 [B, C, H, W]. Returns logits [B, 10] (float32)."""
    B = x_nchw.shape[0]
    x_flat = x_nchw.reshape(B, -1).astype(jnp.float32)   # row-major flatten == .view
    chw = x_flat.shape[1]

    # Pad batch only to the sublane granule (not to tile_b) -> minimal wasted work.
    b_pad = _round_up(max(B, SUBLANE), SUBLANE)
    chw_pad, tk = _pick_tk(chw)
    if (b_pad, chw_pad) != (B, chw):
        x_flat = jnp.pad(x_flat, ((0, b_pad - B), (0, chw_pad - chw)))

    tile_b = _pick_tile_b(b_pad, tile_b)
    num_b = b_pad // tile_b
    num_k = chw_pad // tk

    # Weights to bf16; zero-pad the narrow (64 / 10) dims to lane-dense 128.
    we = params["we"].astype(jnp.bfloat16)                                   # (chw,128)
    if chw_pad != chw:
        we = jnp.pad(we, ((0, chw_pad - chw), (0, 0)))
    be = params["be"].astype(jnp.float32)                                    # (1,128)
    w1 = jnp.pad(params["w1"],
                 ((0, 0), (0, LANE - MID_DIM))).astype(jnp.bfloat16)         # (128,128)
    b1 = jnp.pad(params["b1"],
                 ((0, 0), (0, LANE - MID_DIM))).astype(jnp.float32)          # (1,128)
    w2 = jnp.pad(params["w2"],
                 ((0, LANE - MID_DIM),
                  (0, LANE - NUM_CLASSES))).astype(jnp.bfloat16)             # (128,128)
    b2 = jnp.pad(params["b2"],
                 ((0, 0), (0, LANE - NUM_CLASSES))).astype(jnp.float32)      # (1,128)

    grid = (num_b, num_k)

    cost = pl.CostEstimate(
        flops=2 * b_pad * (chw_pad * ENC_DIM + 2 * LANE * LANE),
        transcendentals=0,
        bytes_accessed=(x_flat.size * 4 + we.size * 2 + w1.size * 2 + w2.size * 2
                        + (be.size + b1.size + b2.size) * 4 + b_pad * LANE * 2),
    )

    def call(single_buffer_consts):
        def const_spec(shape):
            if single_buffer_consts:
                return pl.BlockSpec(shape, lambda i, k: (0, 0),
                                    pipeline_mode=pl.Buffered(1))
            return pl.BlockSpec(shape, lambda i, k: (0, 0))

        if num_k == 1:
            we_spec = const_spec((chw_pad, ENC_DIM))            # fully resident
        else:
            we_spec = pl.BlockSpec((tk, ENC_DIM), lambda i, k: (k, 0))  # streams over K

        return pl.pallas_call(
            _mlp_kernel,
            out_shape=jax.ShapeDtypeStruct((b_pad, LANE), jnp.bfloat16),
            grid_spec=pltpu.PrefetchScalarGridSpec(
                num_scalar_prefetch=0,
                grid=grid,
                in_specs=[
                    pl.BlockSpec((tile_b, tk), lambda i, k: (i, k)),   # x: streamed f32
                    we_spec,
                    const_spec((1, ENC_DIM)),
                    const_spec((ENC_DIM, LANE)),
                    const_spec((1, LANE)),
                    const_spec((LANE, LANE)),
                    const_spec((1, LANE)),
                ],
                out_specs=pl.BlockSpec((tile_b, LANE), lambda i, k: (i, 0)),
                scratch_shapes=[pltpu.VMEM((tile_b, ENC_DIM), jnp.float32)],
            ),
            compiler_params=pltpu.CompilerParams(
                dimension_semantics=("parallel", "arbitrary"),
            ),
            cost_estimate=cost,
        )(x_flat, we, be, w1, b1, w2, b2)

    try:
        out_padded = call(True)
    except Exception:
        # Fallback if pipeline_mode=pl.Buffered(1) is unsupported by this jax build.
        out_padded = call(False)

    # Strip batch/lane padding so padded rows/columns never leak; restore f32 logits.
    return out_padded[:B, :NUM_CLASSES].astype(jnp.float32)


def init_params(key, in_features):
    """Deterministic init mirroring nn.Linear default (uniform +-1/sqrt(fan_in))."""
    ks = jax.random.split(key, 6)

    def lin(kw, kb, fan_in, fan_out):
        bound = 1.0 / jnp.sqrt(jnp.float32(fan_in))
        w = jax.random.uniform(kw, (fan_in, fan_out), jnp.float32, -bound, bound)
        b = jax.random.uniform(kb, (1, fan_out), jnp.float32, -bound, bound)
        return w, b

    we, be = lin(ks[0], ks[1], in_features, ENC_DIM)      # stand-in encoder
    w1, b1 = lin(ks[2], ks[3], ENC_DIM, MID_DIM)          # classifier Linear(128, 64)
    w2, b2 = lin(ks[4], ks[5], MID_DIM, NUM_CLASSES)      # classifier Linear(64, 10)
    return {"we": we, "be": be, "w1": w1, "b1": b1, "w2": w2, "b2": b2}


if __name__ == "__main__":
    B, C, H, W = 2, 4, 16, 16
    key = jax.random.PRNGKey(0)
    kx, kp = jax.random.split(key)

    x = jax.random.normal(kx, (B, C, H, W), dtype=jnp.float32)
    params = init_params(kp, C * H * W)

    logits = gesture_classifier_forward(x, params)
    jax.block_until_ready(logits)
    assert logits.shape == (B, NUM_CLASSES)

    # Pure-JAX reference with matching bf16 rounding of matmul inputs and output.
    def bf(a):
        return a.astype(jnp.bfloat16).astype(jnp.float32)

    xf = x.reshape(B, -1)
    h = jnp.maximum(bf(xf) @ bf(params["we"]) + params["be"], 0.0)
    h = jnp.maximum(bf(h) @ bf(params["w1"]) + params["b1"], 0.0)
    ref = bf(h) @ bf(params["w2"]) + params["b2"]
    ref = bf(ref)   # kernel stores logits as bf16

    assert jnp.allclose(logits, ref, atol=2e-2, rtol=2e-2), (
        float(jnp.max(jnp.abs(logits - ref))))

    print("KERNEL_OK")
</pallas_src>

<mosaic_0001>
module attributes {stable_mosaic.version = 11 : i64} {
  func.func @_mlp_kernel(%arg0: i32, %arg1: i32, %arg2: memref<16x1024xf32, #tpu.memory_space<vmem>>, %arg3: memref<1024x128xbf16, #tpu.memory_space<vmem>>, %arg4: memref<1x128xf32, #tpu.memory_space<vmem>>, %arg5: memref<128x128xbf16, #tpu.memory_space<vmem>>, %arg6: memref<1x128xf32, #tpu.memory_space<vmem>>, %arg7: memref<128x128xbf16, #tpu.memory_space<vmem>>, %arg8: memref<1x128xf32, #tpu.memory_space<vmem>>, %arg9: memref<16x128xbf16, #tpu.memory_space<vmem>>, %arg10: memref<16x128xf32, #tpu.memory_space<vmem>>) attributes {dimension_semantics = [#tpu.dimension_semantics<parallel>, #tpu.dimension_semantics<arbitrary>], iteration_bounds = array<i64: 1, 1>, scalar_prefetch = 0 : i64, scratch_operands = 1 : i64, tpu.core_type = #tpu.core_type<tc>, window_params = [{transform_indices = @transform_0, window_bounds = array<i64: 16, 1024>}, {pipeline_mode = #tpu.pipeline_mode<synchronous>, transform_indices = @transform_1, window_bounds = array<i64: 1024, 128>}, {pipeline_mode = #tpu.pipeline_mode<synchronous>, transform_indices = @transform_2, window_bounds = array<i64: 1, 128>}, {pipeline_mode = #tpu.pipeline_mode<synchronous>, transform_indices = @transform_3, window_bounds = array<i64: 128, 128>}, {pipeline_mode = #tpu.pipeline_mode<synchronous>, transform_indices = @transform_4, window_bounds = array<i64: 1, 128>}, {pipeline_mode = #tpu.pipeline_mode<synchronous>, transform_indices = @transform_5, window_bounds = array<i64: 128, 128>}, {pipeline_mode = #tpu.pipeline_mode<synchronous>, transform_indices = @transform_6, window_bounds = array<i64: 1, 128>}, {transform_indices = @transform_7, window_bounds = array<i64: 16, 128>}]} {
    %c0_i32 = arith.constant 0 : i32
    %0 = arith.cmpi eq, %arg1, %c0_i32 : i32
    %1 = arith.extui %0 : i1 to i32
    %c0_i32_0 = arith.constant 0 : i32
    %2 = arith.cmpi ne, %1, %c0_i32_0 : i32
    scf.if %2 {
      %cst_10 = arith.constant 0.000000e+00 : f32
      %13 = vector.broadcast %cst_10 : f32 to vector<16x128xf32>
      %c0_11 = arith.constant 0 : index
      %c0_12 = arith.constant 0 : index
      %14 = vector.load %arg10[%c0_11, %c0_12] : memref<16x128xf32, #tpu.memory_space<vmem>>, vector<16x128xf32>
      tpu.vector_store %arg10[%c0_11, %c0_12], %13 {strides = array<i32>} : memref<16x128xf32, #tpu.memory_space<vmem>>, vector<16x128xf32>,
    } else {
    }
    %c0 = arith.constant 0 : index
    %c0_1 = arith.constant 0 : index
    %3 = vector.load %arg10[%c0, %c0_1] : memref<16x128xf32, #tpu.memory_space<vmem>>, vector<16x128xf32>
    %c0_2 = arith.constant 0 : index
    %c0_3 = arith.constant 0 : index
    %4 = vector.load %arg2[%c0_2, %c0_3] : memref<16x1024xf32, #tpu.memory_space<vmem>>, vector<16x1024xf32>
    %5 = arith.truncf %4 : vector<16x1024xf32> to vector<16x1024xbf16>
    %c0_4 = arith.constant 0 : index
    %c0_5 = arith.constant 0 : index
    %6 = vector.load %arg3[%c0_4, %c0_5] : memref<1024x128xbf16, #tpu.memory_space<vmem>>, vector<1024x128xbf16>
    %cst = arith.constant dense<0.000000e+00> : vector<16x128xf32>
    %7 = tpu.matmul %5, %6, %cst {dimension_numbers = #tpu.dot_dimension_numbers<[1], [0], [0], [1], [0, 0, 1, 1], [], []>} : vector<16x1024xbf16>, vector<1024x128xbf16>, vector<16x128xf32> -> vector<16x128xf32>
    %8 = arith.addf %3, %7 : vector<16x128xf32>
    %c0_6 = arith.constant 0 : index
    %c0_7 = arith.constant 0 : index
    %9 = vector.load %arg10[%c0_6, %c0_7] : memref<16x128xf32, #tpu.memory_space<vmem>>, vector<16x128xf32>
    tpu.vector_store %arg10[%c0_6, %c0_7], %8 {strides = array<i32>} : memref<16x128xf32, #tpu.memory_space<vmem>>, vector<16x128xf32>,
    %c0_i32_8 = arith.constant 0 : i32
    %10 = arith.cmpi eq, %arg1, %c0_i32_8 : i32
    %11 = arith.extui %10 : i1 to i32
    %c0_i32_9 = arith.constant 0 : i32
    %12 = arith.cmpi ne, %11, %c0_i32_9 : i32
    scf.if %12 {
      %c0_10 = arith.constant 0 : index
      %c0_11 = arith.constant 0 : index
      %13 = vector.load %arg10[%c0_10, %c0_11] : memref<16x128xf32, #tpu.memory_space<vmem>>, vector<16x128xf32>
      %c0_12 = arith.constant 0 : index
      %c0_13 = arith.constant 0 : index
      %14 = vector.load %arg4[%c0_12, %c0_13] : memref<1x128xf32, #tpu.memory_space<vmem>>, vector<1x128xf32>
      %15 = vector.broadcast %14 : vector<1x128xf32> to vector<16x128xf32>
      %16 = arith.addf %13, %15 : vector<16x128xf32>
      %cst_14 = arith.constant 0.000000e+00 : f32
      %17 = vector.broadcast %cst_14 : f32 to vector<16x128xf32>
      %18 = arith.maximumf %16, %17 : vector<16x128xf32>
      %19 = arith.truncf %18 : vector<16x128xf32> to vector<16x128xbf16>
      %c0_15 = arith.constant 0 : index
      %c0_16 = arith.constant 0 : index
      %20 = vector.load %arg5[%c0_15, %c0_16] : memref<128x128xbf16, #tpu.memory_space<vmem>>, vector<128x128xbf16>
      %cst_17 = arith.constant dense<0.000000e+00> : vector<16x128xf32>
      %21 = tpu.matmul %19, %20, %cst_17 {dimension_numbers = #tpu.dot_dimension_numbers<[1], [0], [0], [1], [0, 0, 1, 1], [], []>} : vector<16x128xbf16>, vector<128x128xbf16>, vector<16x128xf32> -> vector<16x128xf32>
      %c0_18 = arith.constant 0 : index
      %c0_19 = arith.constant 0 : index
      %22 = vector.load %arg6[%c0_18, %c0_19] : memref<1x128xf32, #tpu.memory_space<vmem>>, vector<1x128xf32>
      %23 = vector.broadcast %22 : vector<1x128xf32> to vector<16x128xf32>
      %24 = arith.addf %21, %23 : vector<16x128xf32>
      %cst_20 = arith.constant 0.000000e+00 : f32
      %25 = vector.broadcast %cst_20 : f32 to vector<16x128xf32>
      %26 = arith.maximumf %24, %25 : vector<16x128xf32>
      %27 = arith.truncf %26 : vector<16x128xf32> to vector<16x128xbf16>
      %c0_21 = arith.constant 0 : index
      %c0_22 = arith.constant 0 : index
      %28 = vector.load %arg7[%c0_21, %c0_22] : memref<128x128xbf16, #tpu.memory_space<vmem>>, vector<128x128xbf16>
      %cst_23 = arith.constant dense<0.000000e+00> : vector<16x128xf32>
      %29 = tpu.matmul %27, %28, %cst_23 {dimension_numbers = #tpu.dot_dimension_numbers<[1], [0], [0], [1], [0, 0, 1, 1], [], []>} : vector<16x128xbf16>, vector<128x128xbf16>, vector<16x128xf32> -> vector<16x128xf32>
      %c0_24 = arith.constant 0 : index
      %c0_25 = arith.constant 0 : index
      %30 = vector.load %arg8[%c0_24, %c0_25] : memref<1x128xf32, #tpu.memory_space<vmem>>, vector<1x128xf32>
      %31 = vector.broadcast %30 : vector<1x128xf32> to vector<16x128xf32>
      %32 = arith.addf %29, %31 : vector<16x128xf32>
      %33 = arith.truncf %32 : vector<16x128xf32> to vector<16x128xbf16>
      %c0_26 = arith.constant 0 : index
      %c0_27 = arith.constant 0 : index
      %34 = vector.load %arg9[%c0_26, %c0_27] : memref<16x128xbf16, #tpu.memory_space<vmem>>, vector<16x128xbf16>
      tpu.vector_store %arg9[%c0_26, %c0_27], %33 {strides = array<i32>} : memref<16x128xbf16, #tpu.memory_space<vmem>>, vector<16x128xbf16>,
    } else {
    }
    return
  }
  func.func @transform_0(%arg0: i32, %arg1: i32) -> (i32, i32) {
    %c0_i32 = arith.constant 0 : i32
    return %arg0, %arg1 : i32, i32
  }
  func.func @transform_1(%arg0: i32, %arg1: i32) -> (i32, i32) {
    %c0_i32 = arith.constant 0 : i32
    %c0_i32_0 = arith.constant 0 : i32
    %c0_i32_1 = arith.constant 0 : i32
    return %c0_i32, %c0_i32_0 : i32, i32
  }
  func.func @transform_2(%arg0: i32, %arg1: i32) -> (i32, i32) {
    %c0_i32 = arith.constant 0 : i32
    %c0_i32_0 = arith.constant 0 : i32
    %c0_i32_1 = arith.constant 0 : i32
    return %c0_i32, %c0_i32_0 : i32, i32
  }
  func.func @transform_3(%arg0: i32, %arg1: i32) -> (i32, i32) {
    %c0_i32 = arith.constant 0 : i32
    %c0_i32_0 = arith.constant 0 : i32
    %c0_i32_1 = arith.constant 0 : i32
    return %c0_i32, %c0_i32_0 : i32, i32
  }
  func.func @transform_4(%arg0: i32, %arg1: i32) -> (i32, i32) {
    %c0_i32 = arith.constant 0 : i32
    %c0_i32_0 = arith.constant 0 : i32
    %c0_i32_1 = arith.constant 0 : i32
    return %c0_i32, %c0_i32_0 : i32, i32
  }
  func.func @transform_5(%arg0: i32, %arg1: i32) -> (i32, i32) {
    %c0_i32 = arith.constant 0 : i32
    %c0_i32_0 = arith.constant 0 : i32
    %c0_i32_1 = arith.constant 0 : i32
    return %c0_i32, %c0_i32_0 : i32, i32
  }
  func.func @transform_6(%arg0: i32, %arg1: i32) -> (i32, i32) {
    %c0_i32 = arith.constant 0 : i32
    %c0_i32_0 = arith.constant 0 : i32
    %c0_i32_1 = arith.constant 0 : i32
    return %c0_i32, %c0_i32_0 : i32, i32
  }
  func.func @transform_7(%arg0: i32, %arg1: i32) -> (i32, i32) {
    %c0_i32 = arith.constant 0 : i32
    %c0_i32_0 = arith.constant 0 : i32
    return %arg0, %c0_i32 : i32, i32
  }
}

module attributes {stable_mosaic.version = 11 : i64} {
  func.func @_mlp_kernel(%arg0: i32, %arg1: i32, %arg2: memref<16x1024xf32, #tpu.memory_space<vmem>>, %arg3: memref<1024x128xbf16, #tpu.memory_space<vmem>>, %arg4: memref<1x128xf32, #tpu.memory_space<vmem>>, %arg5: memref<128x128xbf16, #tpu.memory_space<vmem>>, %arg6: memref<1x128xf32, #tpu.memory_space<vmem>>, %arg7: memref<128x128xbf16, #tpu.memory_space<vmem>>, %arg8: memref<1x128xf32, #tpu.memory_space<vmem>>, %arg9: memref<16x128xbf16, #tpu.memory_space<vmem>>, %arg10: memref<16x128xf32, #tpu.memory_space<vmem>>) attributes {dimension_semantics = [#tpu.dimension_semantics<parallel>, #tpu.dimension_semantics<arbitrary>], iteration_bounds = array<i64: 1, 1>, scalar_prefetch = 0 : i64, scratch_operands = 1 : i64, tpu.core_type = #tpu.core_type<tc>, window_params = [{transform_indices = @transform_0, window_bounds = array<i64: 16, 1024>}, {pipeline_mode = #tpu.pipeline_mode<synchronous>, transform_indices = @transform_1, window_bounds = array<i64: 1024, 128>}, {pipeline_mode = #tpu.pipeline_mode<synchronous>, transform_indices = @transform_2, window_bounds = array<i64: 1, 128>}, {pipeline_mode = #tpu.pipeline_mode<synchronous>, transform_indices = @transform_3, window_bounds = array<i64: 128, 128>}, {pipeline_mode = #tpu.pipeline_mode<synchronous>, transform_indices = @transform_4, window_bounds = array<i64: 1, 128>}, {pipeline_mode = #tpu.pipeline_mode<synchronous>, transform_indices = @transform_5, window_bounds = array<i64: 128, 128>}, {pipeline_mode = #tpu.pipeline_mode<synchronous>, transform_indices = @transform_6, window_bounds = array<i64: 1, 128>}, {transform_indices = @transform_7, window_bounds = array<i64: 16, 128>}]} {
    %c0_i32 = arith.constant 0 : i32
    %0 = arith.cmpi eq, %arg1, %c0_i32 : i32
    %1 = arith.extui %0 : i1 to i32
    %c0_i32_0 = arith.constant 0 : i32
    %2 = arith.cmpi ne, %1, %c0_i32_0 : i32
    scf.if %2 {
      %cst_10 = arith.constant 0.000000e+00 : f32
      %13 = vector.broadcast %cst_10 : f32 to vector<16x128xf32>
      %c0_11 = arith.constant 0 : index
      %c0_12 = arith.constant 0 : index
      %14 = vector.load %arg10[%c0_11, %c0_12] : memref<16x128xf32, #tpu.memory_space<vmem>>, vector<16x128xf32>
      tpu.vector_store %arg10[%c0_11, %c0_12], %13 {strides = array<i32>} : memref<16x128xf32, #tpu.memory_space<vmem>>, vector<16x128xf32>,
    } else {
    }
    %c0 = arith.constant 0 : index
    %c0_1 = arith.constant 0 : index
    %3 = vector.load %arg10[%c0, %c0_1] : memref<16x128xf32, #tpu.memory_space<vmem>>, vector<16x128xf32>
    %c0_2 = arith.constant 0 : index
    %c0_3 = arith.constant 0 : index
    %4 = vector.load %arg2[%c0_2, %c0_3] : memref<16x1024xf32, #tpu.memory_space<vmem>>, vector<16x1024xf32>
    %5 = arith.truncf %4 : vector<16x1024xf32> to vector<16x1024xbf16>
    %c0_4 = arith.constant 0 : index
    %c0_5 = arith.constant 0 : index
    %6 = vector.load %arg3[%c0_4, %c0_5] : memref<1024x128xbf16, #tpu.memory_space<vmem>>, vector<1024x128xbf16>
    %cst = arith.constant dense<0.000000e+00> : vector<16x128xf32>
    %7 = tpu.matmul %5, %6, %cst {dimension_numbers = #tpu.dot_dimension_numbers<[1], [0], [0], [1], [0, 0, 1, 1], [], []>} : vector<16x1024xbf16>, vector<1024x128xbf16>, vector<16x128xf32> -> vector<16x128xf32>
    %8 = arith.addf %3, %7 : vector<16x128xf32>
    %c0_6 = arith.constant 0 : index
    %c0_7 = arith.constant 0 : index
    %9 = vector.load %arg10[%c0_6, %c0_7] : memref<16x128xf32, #tpu.memory_space<vmem>>, vector<16x128xf32>
    tpu.vector_store %arg10[%c0_6, %c0_7], %8 {strides = array<i32>} : memref<16x128xf32, #tpu.memory_space<vmem>>, vector<16x128xf32>,
    %c0_i32_8 = arith.constant 0 : i32
    %10 = arith.cmpi eq, %arg1, %c0_i32_8 : i32
    %11 = arith.extui %10 : i1 to i32
    %c0_i32_9 = arith.constant 0 : i32
    %12 = arith.cmpi ne, %11, %c0_i32_9 : i32
    scf.if %12 {
      %c0_10 = arith.constant 0 : index
      %c0_11 = arith.constant 0 : index
      %13 = vector.load %arg10[%c0_10, %c0_11] : memref<16x128xf32, #tpu.memory_space<vmem>>, vector<16x128xf32>
      %c0_12 = arith.constant 0 : index
      %c0_13 = arith.constant 0 : index
      %14 = vector.load %arg4[%c0_12, %c0_13] : memref<1x128xf32, #tpu.memory_space<vmem>>, vector<1x128xf32>
      %15 = vector.broadcast %14 : vector<1x128xf32> to vector<16x128xf32>
      %16 = arith.addf %13, %15 : vector<16x128xf32>
      %cst_14 = arith.constant 0.000000e+00 : f32
      %17 = vector.broadcast %cst_14 : f32 to vector<16x128xf32>
      %18 = arith.maximumf %16, %17 : vector<16x128xf32>
      %19 = arith.truncf %18 : vector<16x128xf32> to vector<16x128xbf16>
      %c0_15 = arith.constant 0 : index
      %c0_16 = arith.constant 0 : index
      %20 = vector.load %arg5[%c0_15, %c0_16] : memref<128x128xbf16, #tpu.memory_space<vmem>>, vector<128x128xbf16>
      %cst_17 = arith.constant dense<0.000000e+00> : vector<16x128xf32>
      %21 = tpu.matmul %19, %20, %cst_17 {dimension_numbers = #tpu.dot_dimension_numbers<[1], [0], [0], [1], [0, 0, 1, 1], [], []>} : vector<16x128xbf16>, vector<128x128xbf16>, vector<16x128xf32> -> vector<16x128xf32>
      %c0_18 = arith.constant 0 : index
      %c0_19 = arith.constant 0 : index
      %22 = vector.load %arg6[%c0_18, %c0_19] : memref<1x128xf32, #tpu.memory_space<vmem>>, vector<1x128xf32>
      %23 = vector.broadcast %22 : vector<1x128xf32> to vector<16x128xf32>
      %24 = arith.addf %21, %23 : vector<16x128xf32>
      %cst_20 = arith.constant 0.000000e+00 : f32
      %25 = vector.broadcast %cst_20 : f32 to vector<16x128xf32>
      %26 = arith.maximumf %24, %25 : vector<16x128xf32>
      %27 = arith.truncf %26 : vector<16x128xf32> to vector<16x128xbf16>
      %c0_21 = arith.constant 0 : index
      %c0_22 = arith.constant 0 : index
      %28 = vector.load %arg7[%c0_21, %c0_22] : memref<128x128xbf16, #tpu.memory_space<vmem>>, vector<128x128xbf16>
      %cst_23 = arith.constant dense<0.000000e+00> : vector<16x128xf32>
      %29 = tpu.matmul %27, %28, %cst_23 {dimension_numbers = #tpu.dot_dimension_numbers<[1], [0], [0], [1], [0, 0, 1, 1], [], []>} : vector<16x128xbf16>, vector<128x128xbf16>, vector<16x128xf32> -> vector<16x128xf32>
      %c0_24 = arith.constant 0 : index
      %c0_25 = arith.constant 0 : index
      %30 = vector.load %arg8[%c0_24, %c0_25] : memref<1x128xf32, #tpu.memory_space<vmem>>, vector<1x128xf32>
      %31 = vector.broadcast %30 : vector<1x128xf32> to vector<16x128xf32>
      %32 = arith.addf %29, %31 : vector<16x128xf32>
      %33 = arith.truncf %32 : vector<16x128xf32> to vector<16x128xbf16>
      %c0_26 = arith.constant 0 : index
      %c0_27 = arith.constant 0 : index
      %34 = vector.load %arg9[%c0_26, %c0_27] : memref<16x128xbf16, #tpu.memory_space<vmem>>, vector<16x128xbf16>
      tpu.vector_store %arg9[%c0_26, %c0_27], %33 {strides = array<i32>} : memref<16x128xbf16, #tpu.memory_space<vmem>>, vector<16x128xbf16>,
    } else {
    }
    return
  }
  func.func @transform_0(%arg0: i32, %arg1: i32) -> (i32, i32) {
    %c0_i32 = arith.constant 0 : i32
    return %arg0, %arg1 : i32, i32
  }
  func.func @transform_1(%arg0: i32, %arg1: i32) -> (i32, i32) {
    %c0_i32 = arith.constant 0 : i32
    %c0_i32_0 = arith.constant 0 : i32
    %c0_i32_1 = arith.constant 0 : i32
    return %c0_i32, %c0_i32_0 : i32, i32
  }
  func.func @transform_2(%arg0: i32, %arg1: i32) -> (i32, i32) {
    %c0_i32 = arith.constant 0 : i32
    %c0_i32_0 = arith.constant 0 : i32
    %c0_i32_1 = arith.constant 0 : i32
    return %c0_i32, %c0_i32_0 : i32, i32
  }
  func.func @transform_3(%arg0: i32, %arg1: i32) -> (i32, i32) {
    %c0_i32 = arith.constant 0 : i32
    %c0_i32_0 = arith.constant 0 : i32
    %c0_i32_1 = arith.constant 0 : i32
    return %c0_i32, %c0_i32_0 : i32, i32
  }
  func.func @transform_4(%arg0: i32, %arg1: i32) -> (i32, i32) {
    %c0_i32 = arith.constant 0 : i32
    %c0_i32_0 = arith.constant 0 : i32
    %c0_i32_1 = arith.constant 0 : i32
    return %c0_i32, %c0_i32_0 : i32, i32
  }
  func.func @transform_5(%arg0: i32, %arg1: i32) -> (i32, i32) {
    %c0_i32 = arith.constant 0 : i32
    %c0_i32_0 = arith.constant 0 : i32
    %c0_i32_1 = arith.constant 0 : i32
    return %c0_i32, %c0_i32_0 : i32, i32
  }
  func.func @transform_6(%arg0: i32, %arg1: i32) -> (i32, i32) {
    %c0_i32 = arith.constant 0 : i32
    %c0_i32_0 = arith.constant 0 : i32
    %c0_i32_1 = arith.constant 0 : i32
    return %c0_i32, %c0_i32_0 : i32, i32
  }
  func.func @transform_7(%arg0: i32, %arg1: i32) -> (i32, i32) {
    %c0_i32 = arith.constant 0 : i32
    %c0_i32_0 = arith.constant 0 : i32
    return %arg0, %c0_i32 : i32, i32
  }
}

</mosaic_0001>

<llo_original>
// kernel: tpu_custom_call.1
$region0: #{tpu_custom_call.1}
  #allocation0 [shape = 'u32[]', space=smem, size = 0x4, offset = 0x4, fixed_abs, tag = 'smem constant byte address 0x4 - core index']
  #allocation1 [shape = 'u32[144,128]{1,0:T(1,128)}', space=vmem, size = 0x12000, scoped, tag = 'internal scratch']
  #allocation2 [shape = 'f32[16,128]{1,0:T(8,128)}', space=vmem, size = 0x2000, scoped, tag = 'scratch operand']
  %s0 = inlined_call_operand.hbm [shape: f32[16,1024], index: 0, kind: input, shape index: {}]
  %s1 = inlined_call_operand.hbm [shape: bf16[1024,128], index: 1, kind: input, shape index: {}]
  %s2 = inlined_call_operand.vmem [shape: f32[1,128], index: 2, kind: input, shape index: {}]
  %s3 = inlined_call_operand.hbm [shape: bf16[128,128], index: 3, kind: input, shape index: {}]
  %s4 = inlined_call_operand.vmem [shape: f32[1,128], index: 4, kind: input, shape index: {}]
  %s5 = inlined_call_operand.hbm [shape: bf16[128,128], index: 5, kind: input, shape index: {}]
  %s6 = inlined_call_operand.vmem [shape: f32[1,128], index: 6, kind: input, shape index: {}]
  %s7 = inlined_call_operand.hbm [shape: bf16[16,128], index: 7, kind: output, shape index: {}]
  %s8 = sld [smem:[#allocation0]]
  $region62: #{tpu_custom_call.1} parent=0
    _
  %s10 = ssub.s32 1, %s8
  %s11 = scalar_select 0, %s10, %s8
  $region1: #{tpu_custom_call.1} parent=0
    #allocation3 [shape = 'u8[65536]{0}', space=vmem, size = 0x10000, scoped, tag = 'input window, operand 0, single buffered']
    #allocation4 [shape = 's32[1]{0}', space=sflag, size = 0x4, scoped, tag = 'scoped memory for tpu_custom_call.1']
    #allocation5 [shape = 's32[1]{0}', space=sflag, size = 0x4, scoped, tag = 'scoped memory for tpu_custom_call.1']
    #allocation6 [shape = 'u8[262144]{0}', space=vmem, size = 0x40000, scoped, tag = 'input window, operand 1, single buffered']
    #allocation7 [shape = 's32[1]{0}', space=sflag, size = 0x4, scoped, tag = 'scoped memory for tpu_custom_call.1']
    #allocation8 [shape = 'u8[32768]{0}', space=vmem, size = 0x8000, scoped, tag = 'input window, operand 3, single buffered']
    #allocation9 [shape = 'u8[32768]{0}', space=vmem, size = 0x8000, scoped, tag = 'input window, operand 5, single buffered']
    #allocation10 [shape = 's32[1]{0}', space=sflag, size = 0x4, scoped, tag = 'scoped memory for tpu_custom_call.1']
    #allocation11 [shape = 'u8[4096]{0}', space=vmem, size = 0x1000, scoped, tag = 'output window, operand 0, single buffered']
    %12 = vsyncpa [#allocation4], 0
    %13 = vsyncpa [#allocation7], 0
    %14 = vsyncpa [#allocation10], 0
    %15 = vsyncpa [#allocation5], 0
    // Predicated region
    $region2: #{tpu_custom_call.1} parent=1 // pred_check
      _
    $region3: #{tpu_custom_call.1} parent=1 // pred_check_branch
      %17 = sbr.rel (0) target = $region5
    $region4: #{tpu_custom_call.1} parent=1 // pred_region
      %s19 = ssub.s32 2048, 2048
      %20 = vsyncadd [#allocation4], %s19
      %s21 = sshll.u32 [#allocation3], 4
      %s22 = int_to_ptr.vmem [resolvable:$true] %s21
      %27 = dma.hbm_to_vmem [thread:$0]  %s0, 2048, %s22, [#allocation4], 1024, 1024, 64
    $region5: #{tpu_custom_call.1} parent=1 // pred_fallthru
      _
    // Predicated region
    $region6: #{tpu_custom_call.1} parent=1 // pred_check
      _
    $region7: #{tpu_custom_call.1} parent=1 // pred_check_branch
      %29 = sbr.rel (0) target = $region9
    $region8: #{tpu_custom_call.1} parent=1 // pred_region
      %s31 = ssub.s32 8192, 8192
      %32 = vsyncadd [#allocation7], %s31
      %s33 = sshll.u32 [#allocation6], 4
      %s34 = int_to_ptr.vmem [resolvable:$true] %s33
      %39 = dma.hbm_to_vmem [thread:$0]  %s1, 8192, %s34, [#allocation7], 64, 64, 4
    $region9: #{tpu_custom_call.1} parent=1 // pred_fallthru
      _
    // Predicated region
    $region10: #{tpu_custom_call.1} parent=1 // pred_check
      _
    $region11: #{tpu_custom_call.1} parent=1 // pred_check_branch
      %41 = sbr.rel (0) target = $region13
    $region12: #{tpu_custom_call.1} parent=1 // pred_region
      _
    $region13: #{tpu_custom_call.1} parent=1 // pred_fallthru
      _
    // Predicated region
    $region14: #{tpu_custom_call.1} parent=1 // pred_check
      _
    $region15: #{tpu_custom_call.1} parent=1 // pred_check_branch
      %43 = sbr.rel (0) target = $region17
    $region16: #{tpu_custom_call.1} parent=1 // pred_region
      %s45 = ssub.s32 1024, 1024
      %46 = vsyncadd [#allocation7], %s45
      %s47 = sshll.u32 [#allocation8], 4
      %s48 = int_to_ptr.vmem [resolvable:$true] %s47
      %53 = dma.hbm_to_vmem [thread:$0]  %s3, 1024, %s48, [#allocation7], 64, 64, 4
    $region17: #{tpu_custom_call.1} parent=1 // pred_fallthru
      _
    // Predicated region
    $region18: #{tpu_custom_call.1} parent=1 // pred_check
      _
    $region19: #{tpu_custom_call.1} parent=1 // pred_check_branch
      %55 = sbr.rel (0) target = $region21
    $region20: #{tpu_custom_call.1} parent=1 // pred_region
      _
    $region21: #{tpu_custom_call.1} parent=1 // pred_fallthru
      _
    // Predicated region
    $region22: #{tpu_custom_call.1} parent=1 // pred_check
      _
    $region23: #{tpu_custom_call.1} parent=1 // pred_check_branch
      %57 = sbr.rel (0) target = $region25
    $region24: #{tpu_custom_call.1} parent=1 // pred_region
      %s59 = ssub.s32 1024, 1024
      %60 = vsyncadd [#allocation10], %s59
      %s61 = sshll.u32 [#allocation9], 4
      %s62 = int_to_ptr.vmem [resolvable:$true] %s61
      %67 = dma.hbm_to_vmem [thread:$0]  %s5, 1024, %s62, [#allocation10], 64, 64, 4
    $region25: #{tpu_custom_call.1} parent=1 // pred_fallthru
      _
    // Predicated region
    $region26: #{tpu_custom_call.1} parent=1 // pred_check
      _
    $region27: #{tpu_custom_call.1} parent=1 // pred_check_branch
      %69 = sbr.rel (0) target = $region29
    $region28: #{tpu_custom_call.1} parent=1 // pred_region
      _
    $region29: #{tpu_custom_call.1} parent=1 // pred_fallthru
      _
    // Predicated region
    $region30: #{tpu_custom_call.1} parent=1 // pred_check
      _
    $region31: #{tpu_custom_call.1} parent=1 // pred_check_branch
      %71 = sbr.rel (0) target = $region33
    $region32: #{tpu_custom_call.1} parent=1 // pred_region
      %72 = dma.done [#allocation4], 2048
    $region33: #{tpu_custom_call.1} parent=1 // pred_fallthru
      _
    // Predicated region
    $region34: #{tpu_custom_call.1} parent=1 // pred_check
      _
    $region35: #{tpu_custom_call.1} parent=1 // pred_check_branch
      %74 = sbr.rel (0) target = $region37
    $region36: #{tpu_custom_call.1} parent=1 // pred_region
      %75 = dma.done [#allocation7], 8192
    $region37: #{tpu_custom_call.1} parent=1 // pred_fallthru
      _
    // Predicated region
    $region38: #{tpu_custom_call.1} parent=1 // pred_check
      _
    $region39: #{tpu_custom_call.1} parent=1 // pred_check_branch
      %77 = sbr.rel (0) target = $region41
    $region40: #{tpu_custom_call.1} parent=1 // pred_region
      %78 = dma.done [#allocation7], 1024
    $region41: #{tpu_custom_call.1} parent=1 // pred_fallthru
      _
    // Predicated region
    $region42: #{tpu_custom_call.1} parent=1 // pred_check
      _
    $region43: #{tpu_custom_call.1} parent=1 // pred_check_branch
      %80 = sbr.rel (0) target = $region45
    $region44: #{tpu_custom_call.1} parent=1 // pred_region
      %81 = dma.done [#allocation10], 1024
    $region45: #{tpu_custom_call.1} parent=1 // pred_fallthru
      _
    %p83 = scmp.eq.s32.totalorder 0, 0
    // Predicated region
    $region46: #{tpu_custom_call.1} parent=1 // pred_check
      %p84 = pneg %p83
    $region47: #{tpu_custom_call.1} parent=1 // pred_check_branch
      %86 = sbr.rel (%p84) target = $region49
    $region48: #{tpu_custom_call.1} parent=1 // pred_region
      %87 = vst [vmem:[#allocation2] sm:$0xff] 0.0
      %88 = vst [vmem:[#allocation2 + $0x8] sm:$0xff] 0.0
    $region49: #{tpu_custom_call.1} parent=1 // pred_fallthru
      _
    %v89 = vld [vmem:[#allocation2] sm:$0xff]
    %v90 = vld [vmem:[#allocation2 + $0x8] sm:$0xff]
    %v91 = vld [vmem:[#allocation3] sm:$0xff]
    %v92 = vld [vmem:[#allocation3 + $0x8] sm:$0xff]
    %v93 = vld [vmem:[#allocation3 + $0x10] sm:$0xff]
    %v94 = vld [vmem:[#allocation3 + $0x18] sm:$0xff]
    %v95 = vld [vmem:[#allocation3 + $0x20] sm:$0xff]
    %v96 = vld [vmem:[#allocation3 + $0x28] sm:$0xff]
    %v97 = vld [vmem:[#allocation3 + $0x30] sm:$0xff]
    %v98 = vld [vmem:[#allocation3 + $0x38] sm:$0xff]
    %v99 = vld [vmem:[#allocation3 + $0x40] sm:$0xff]
    %v100 = vld [vmem:[#allocation3 + $0x48] sm:$0xff]
    %v101 = vld [vmem:[#allocation3 + $0x50] sm:$0xff]
    %v102 = vld [vmem:[#allocation3 + $0x58] sm:$0xff]
    %v103 = vld [vmem:[#allocation3 + $0x60] sm:$0xff]
    %v104 = vld [vmem:[#allocation3 + $0x68] sm:$0xff]
    %v105 = vld [vmem:[#allocation3 + $0x70] sm:$0xff]
    %v106 = vld [vmem:[#allocation3 + $0x78] sm:$0xff]
    %v107 = vpack.c.bf16 %v99, %v91
    %v108 = vpack.c.bf16 %v100, %v92
    %v109 = vpack.c.bf16 %v101, %v93
    %v110 = vpack.c.bf16 %v102, %v94
    %v111 = vpack.c.bf16 %v103, %v95
    %v112 = vpack.c.bf16 %v104, %v96
    %v113 = vpack.c.bf16 %v105, %v97
    %v114 = vpack.c.bf16 %v106, %v98
    %v115 = vld [vmem:[#allocation6] sm:$0xf]
    %v116 = vld [vmem:[#allocation6 + $0x4] sm:$0xf]
    %v117 = vld [vmem:[#allocation6 + $0x8] sm:$0xf]
    %v118 = vld [vmem:[#allocation6 + $0xc] sm:$0xf]
    %v119 = vld [vmem:[#allocation6 + $0x10] sm:$0xf]
    %v120 = vld [vmem:[#allocation6 + $0x14] sm:$0xf]
    %v121 = vld [vmem:[#allocation6 + $0x18] sm:$0xf]
    %v122 = vld [vmem:[#allocation6 + $0x1c] sm:$0xf]
    %v123 = vld [vmem:[#allocation6 + $0x20] sm:$0xf]
    %v124 = vld [vmem:[#allocation6 + $0x24] sm:$0xf]
    %v125 = vld [vmem:[#allocation6 + $0x28] sm:$0xf]
    %v126 = vld [vmem:[#allocation6 + $0x2c] sm:$0xf]
    %v127 = vld [vmem:[#allocation6 + $0x30] sm:$0xf]
    %v128 = vld [vmem:[#allocation6 + $0x34] sm:$0xf]
    %v129 = vld [vmem:[#allocation6 + $0x38] sm:$0xf]
    %v130 = vld [vmem:[#allocation6 + $0x3c] sm:$0xf]
    %v131 = vld [vmem:[#allocation6 + $0x40] sm:$0xf]
    %v132 = vld [vmem:[#allocation6 + $0x44] sm:$0xf]
    %v133 = vld [vmem:[#allocation6 + $0x48] sm:$0xf]
    %v134 = vld [vmem:[#allocation6 + $0x4c] sm:$0xf]
    %v135 = vld [vmem:[#allocation6 + $0x50] sm:$0xf]
    %v136 = vld [vmem:[#allocation6 + $0x54] sm:$0xf]
    %v137 = vld [vmem:[#allocation6 + $0x58] sm:$0xf]
    %v138 = vld [vmem:[#allocation6 + $0x5c] sm:$0xf]
    %v139 = vld [vmem:[#allocation6 + $0x60] sm:$0xf]
    %v140 = vld [vmem:[#allocation6 + $0x64] sm:$0xf]
    %v141 = vld [vmem:[#allocation6 + $0x68] sm:$0xf]
    %v142 = vld [vmem:[#allocation6 + $0x6c] sm:$0xf]
    %v143 = vld [vmem:[#allocation6 + $0x70] sm:$0xf]
    %v144 = vld [vmem:[#allocation6 + $0x74] sm:$0xf]
    %v145 = vld [vmem:[#allocation6 + $0x78] sm:$0xf]
    %v146 = vld [vmem:[#allocation6 + $0x7c] sm:$0xf]
    %v147 = vld [vmem:[#allocation6 + $0x80] sm:$0xf]
    %v148 = vld [vmem:[#allocation6 + $0x84] sm:$0xf]
    %v149 = vld [vmem:[#allocation6 + $0x88] sm:$0xf]
    %v150 = vld [vmem:[#allocation6 + $0x8c] sm:$0xf]
    %v151 = vld [vmem:[#allocation6 + $0x90] sm:$0xf]
    %v152 = vld [vmem:[#allocation6 + $0x94] sm:$0xf]
    %v153 = vld [vmem:[#allocation6 + $0x98] sm:$0xf]
    %v154 = vld [vmem:[#allocation6 + $0x9c] sm:$0xf]
    %v155 = vld [vmem:[#allocation6 + $0xa0] sm:$0xf]
    %v156 = vld [vmem:[#allocation6 + $0xa4] sm:$0xf]
    %v157 = vld [vmem:[#allocation6 + $0xa8] sm:$0xf]
    %v158 = vld [vmem:[#allocation6 + $0xac] sm:$0xf]
    %v159 = vld [vmem:[#allocation6 + $0xb0] sm:$0xf]
    %v160 = vld [vmem:[#allocation6 + $0xb4] sm:$0xf]
    %v161 = vld [vmem:[#allocation6 + $0xb8] sm:$0xf]
    %v162 = vld [vmem:[#allocation6 + $0xbc] sm:$0xf]
    %v163 = vld [vmem:[#allocation6 + $0xc0] sm:$0xf]
    %v164 = vld [vmem:[#allocation6 + $0xc4] sm:$0xf]
    %v165 = vld [vmem:[#allocation6 + $0xc8] sm:$0xf]
    %v166 = vld [vmem:[#allocation6 + $0xcc] sm:$0xf]
    %v167 = vld [vmem:[#allocation6 + $0xd0] sm:$0xf]
    %v168 = vld [vmem:[#allocation6 + $0xd4] sm:$0xf]
    %v169 = vld [vmem:[#allocation6 + $0xd8] sm:$0xf]
    %v170 = vld [vmem:[#allocation6 + $0xdc] sm:$0xf]
    %v171 = vld [vmem:[#allocation6 + $0xe0] sm:$0xf]
    %v172 = vld [vmem:[#allocation6 + $0xe4] sm:$0xf]
    %v173 = vld [vmem:[#allocation6 + $0xe8] sm:$0xf]
    %v174 = vld [vmem:[#allocation6 + $0xec] sm:$0xf]
    %v175 = vld [vmem:[#allocation6 + $0xf0] sm:$0xf]
    %v176 = vld [vmem:[#allocation6 + $0xf4] sm:$0xf]
    %v177 = vld [vmem:[#allocation6 + $0xf8] sm:$0xf]
    %v178 = vld [vmem:[#allocation6 + $0xfc] sm:$0xf]
    %v179 = vld [vmem:[#allocation6 + $0x100] sm:$0xf]
    %v180 = vld [vmem:[#allocation6 + $0x104] sm:$0xf]
    %v181 = vld [vmem:[#allocation6 + $0x108] sm:$0xf]
    %v182 = vld [vmem:[#allocation6 + $0x10c] sm:$0xf]
    %v183 = vld [vmem:[#allocation6 + $0x110] sm:$0xf]
    %v184 = vld [vmem:[#allocation6 + $0x114] sm:$0xf]
    %v185 = vld [vmem:[#allocation6 + $0x118] sm:$0xf]
    %v186 = vld [vmem:[#allocation6 + $0x11c] sm:$0xf]
    %v187 = vld [vmem:[#allocation6 + $0x120] sm:$0xf]
    %v188 = vld [vmem:[#allocation6 + $0x124] sm:$0xf]
    %v189 = vld [vmem:[#allocation6 + $0x128] sm:$0xf]
    %v190 = vld [vmem:[#allocation6 + $0x12c] sm:$0xf]
    %v191 = vld [vmem:[#allocation6 + $0x130] sm:$0xf]
    %v192 = vld [vmem:[#allocation6 + $0x134] sm:$0xf]
    %v193 = vld [vmem:[#allocation6 + $0x138] sm:$0xf]
    %v194 = vld [vmem:[#allocation6 + $0x13c] sm:$0xf]
    %v195 = vld [vmem:[#allocation6 + $0x140] sm:$0xf]
    %v196 = vld [vmem:[#allocation6 + $0x144] sm:$0xf]
    %v197 = vld [vmem:[#allocation6 + $0x148] sm:$0xf]
    %v198 = vld [vmem:[#allocation6 + $0x14c] sm:$0xf]
    %v199 = vld [vmem:[#allocation6 + $0x150] sm:$0xf]
    %v200 = vld [vmem:[#allocation6 + $0x154] sm:$0xf]
    %v201 = vld [vmem:[#allocation6 + $0x158] sm:$0xf]
    %v202 = vld [vmem:[#allocation6 + $0x15c] sm:$0xf]
    %v203 = vld [vmem:[#allocation6 + $0x160] sm:$0xf]
    %v204 = vld [vmem:[#allocation6 + $0x164] sm:$0xf]
    %v205 = vld [vmem:[#allocation6 + $0x168] sm:$0xf]
    %v206 = vld [vmem:[#allocation6 + $0x16c] sm:$0xf]
    %v207 = vld [vmem:[#allocation6 + $0x170] sm:$0xf]
    %v208 = vld [vmem:[#allocation6 + $0x174] sm:$0xf]
    %v209 = vld [vmem:[#allocation6 + $0x178] sm:$0xf]
    %v210 = vld [vmem:[#allocation6 + $0x17c] sm:$0xf]
    %v211 = vld [vmem:[#allocation6 + $0x180] sm:$0xf]
    %v212 = vld [vmem:[#allocation6 + $0x184] sm:$0xf]
    %v213 = vld [vmem:[#allocation6 + $0x188] sm:$0xf]
    %v214 = vld [vmem:[#allocation6 + $0x18c] sm:$0xf]
    %v215 = vld [vmem:[#allocation6 + $0x190] sm:$0xf]
    %v216 = vld [vmem:[#allocation6 + $0x194] sm:$0xf]
    %v217 = vld [vmem:[#allocation6 + $0x198] sm:$0xf]
    %v218 = vld [vmem:[#allocation6 + $0x19c] sm:$0xf]
    %v219 = vld [vmem:[#allocation6 + $0x1a0] sm:$0xf]
    %v220 = vld [vmem:[#allocation6 + $0x1a4] sm:$0xf]
    %v221 = vld [vmem:[#allocation6 + $0x1a8] sm:$0xf]
    %v222 = vld [vmem:[#allocation6 + $0x1ac] sm:$0xf]
    %v223 = vld [vmem:[#allocation6 + $0x1b0] sm:$0xf]
    %v224 = vld [vmem:[#allocation6 + $0x1b4] sm:$0xf]
    %v225 = vld [vmem:[#allocation6 + $0x1b8] sm:$0xf]
    %v226 = vld [vmem:[#allocation6 + $0x1bc] sm:$0xf]
    %v227 = vld [vmem:[#allocation6 + $0x1c0] sm:$0xf]
    %v228 = vld [vmem:[#allocation6 + $0x1c4] sm:$0xf]
    %v229 = vld [vmem:[#allocation6 + $0x1c8] sm:$0xf]
    %v230 = vld [vmem:[#allocation6 + $0x1cc] sm:$0xf]
    %v231 = vld [vmem:[#allocation6 + $0x1d0] sm:$0xf]
    %v232 = vld [vmem:[#allocation6 + $0x1d4] sm:$0xf]
    %v233 = vld [vmem:[#allocation6 + $0x1d8] sm:$0xf]
    %v234 = vld [vmem:[#allocation6 + $0x1dc] sm:$0xf]
    %v235 = vld [vmem:[#allocation6 + $0x1e0] sm:$0xf]
    %v236 = vld [vmem:[#allocation6 + $0x1e4] sm:$0xf]
    %v237 = vld [vmem:[#allocation6 + $0x1e8] sm:$0xf]
    %v238 = vld [vmem:[#allocation6 + $0x1ec] sm:$0xf]
    %v239 = vld [vmem:[#allocation6 + $0x1f0] sm:$0xf]
    %v240 = vld [vmem:[#allocation6 + $0x1f4] sm:$0xf]
    %v241 = vld [vmem:[#allocation6 + $0x1f8] sm:$0xf]
    %v242 = vld [vmem:[#allocation6 + $0x1fc] sm:$0xf]
    %v371 = vunpack.c.l.b16 %v115
    %v372 = vunpack.c.l.b16 %v116
    %v373 = vunpack.c.l.b16 %v117
    %v374 = vunpack.c.l.b16 %v118
    %v375 = vunpack.c.l.b16 %v119
    %v376 = vunpack.c.l.b16 %v120
    %v377 = vunpack.c.l.b16 %v121
    %v378 = vunpack.c.l.b16 %v122
    %v379 = vunpack.c.l.b16 %v123
    %v380 = vunpack.c.l.b16 %v124
    %v381 = vunpack.c.l.b16 %v125
    %v382 = vunpack.c.l.b16 %v126
    %v383 = vunpack.c.l.b16 %v127
    %v384 = vunpack.c.l.b16 %v128
    %v385 = vunpack.c.l.b16 %v129
    %v386 = vunpack.c.l.b16 %v130
    %v387 = vunpack.c.l.b16 %v131
    %v388 = vunpack.c.l.b16 %v132
    %v389 = vunpack.c.l.b16 %v133
    %v390 = vunpack.c.l.b16 %v134
    %v391 = vunpack.c.l.b16 %v135
    %v392 = vunpack.c.l.b16 %v136
    %v393 = vunpack.c.l.b16 %v137
    %v394 = vunpack.c.l.b16 %v138
    %v395 = vunpack.c.l.b16 %v139
    %v396 = vunpack.c.l.b16 %v140
    %v397 = vunpack.c.l.b16 %v141
    %v398 = vunpack.c.l.b16 %v142
    %v399 = vunpack.c.l.b16 %v143
    %v400 = vunpack.c.l.b16 %v144
    %v401 = vunpack.c.l.b16 %v145
    %v402 = vunpack.c.l.b16 %v146
    %v403 = vunpack.c.l.b16 %v147
    %v404 = vunpack.c.l.b16 %v148
    %v405 = vunpack.c.l.b16 %v149
    %v406 = vunpack.c.l.b16 %v150
    %v407 = vunpack.c.l.b16 %v151
    %v408 = vunpack.c.l.b16 %v152
    %v409 = vunpack.c.l.b16 %v153
    %v410 = vunpack.c.l.b16 %v154
    %v411 = vunpack.c.l.b16 %v155
    %v412 = vunpack.c.l.b16 %v156
    %v413 = vunpack.c.l.b16 %v157
    %v414 = vunpack.c.l.b16 %v158
    %v415 = vunpack.c.l.b16 %v159
    %v416 = vunpack.c.l.b16 %v160
    %v417 = vunpack.c.l.b16 %v161
    %v418 = vunpack.c.l.b16 %v162
    %v419 = vunpack.c.l.b16 %v163
    %v420 = vunpack.c.l.b16 %v164
    %v421 = vunpack.c.l.b16 %v165
    %v422 = vunpack.c.l.b16 %v166
    %v423 = vunpack.c.l.b16 %v167
    %v424 = vunpack.c.l.b16 %v168
    %v425 = vunpack.c.l.b16 %v169
    %v426 = vunpack.c.l.b16 %v170
    %v427 = vunpack.c.l.b16 %v171
    %v428 = vunpack.c.l.b16 %v172
    %v429 = vunpack.c.l.b16 %v173
    %v430 = vunpack.c.l.b16 %v174
    %v431 = vunpack.c.l.b16 %v175
    %v432 = vunpack.c.l.b16 %v176
    %v433 = vunpack.c.l.b16 %v177
    %v434 = vunpack.c.l.b16 %v178
    %v435 = vunpack.c.l.b16 %v179
    %v436 = vunpack.c.l.b16 %v180
    %v437 = vunpack.c.l.b16 %v181
    %v438 = vunpack.c.l.b16 %v182
    %v439 = vunpack.c.l.b16 %v183
    %v440 = vunpack.c.l.b16 %v184
    %v441 = vunpack.c.l.b16 %v185
    %v442 = vunpack.c.l.b16 %v186
    %v443 = vunpack.c.l.b16 %v187
    %v444 = vunpack.c.l.b16 %v188
    %v445 = vunpack.c.l.b16 %v189
    %v446 = vunpack.c.l.b16 %v190
    %v447 = vunpack.c.l.b16 %v191
    %v448 = vunpack.c.l.b16 %v192
    %v449 = vunpack.c.l.b16 %v193
    %v450 = vunpack.c.l.b16 %v194
    %v451 = vunpack.c.l.b16 %v195
    %v452 = vunpack.c.l.b16 %v196
    %v453 = vunpack.c.l.b16 %v197
    %v454 = vunpack.c.l.b16 %v198
    %v455 = vunpack.c.l.b16 %v199
    %v456 = vunpack.c.l.b16 %v200
    %v457 = vunpack.c.l.b16 %v201
    %v458 = vunpack.c.l.b16 %v202
    %v459 = vunpack.c.l.b16 %v203
    %v460 = vunpack.c.l.b16 %v204
    %v461 = vunpack.c.l.b16 %v205
    %v462 = vunpack.c.l.b16 %v206
    %v463 = vunpack.c.l.b16 %v207
    %v464 = vunpack.c.l.b16 %v208
    %v465 = vunpack.c.l.b16 %v209
    %v466 = vunpack.c.l.b16 %v210
    %v467 = vunpack.c.l.b16 %v211
    %v468 = vunpack.c.l.b16 %v212
    %v469 = vunpack.c.l.b16 %v213
    %v470 = vunpack.c.l.b16 %v214
    %v471 = vunpack.c.l.b16 %v215
    %v472 = vunpack.c.l.b16 %v216
    %v473 = vunpack.c.l.b16 %v217
    %v474 = vunpack.c.l.b16 %v218
    %v475 = vunpack.c.l.b16 %v219
    %v476 = vunpack.c.l.b16 %v220
    %v477 = vunpack.c.l.b16 %v221
    %v478 = vunpack.c.l.b16 %v222
    %v479 = vunpack.c.l.b16 %v223
    %v480 = vunpack.c.l.b16 %v224
    %v481 = vunpack.c.l.b16 %v225
    %v482 = vunpack.c.l.b16 %v226
    %v483 = vunpack.c.l.b16 %v227
    %v484 = vunpack.c.l.b16 %v228
    %v485 = vunpack.c.l.b16 %v229
    %v486 = vunpack.c.l.b16 %v230
    %v487 = vunpack.c.l.b16 %v231
    %v488 = vunpack.c.l.b16 %v232
    %v489 = vunpack.c.l.b16 %v233
    %v490 = vunpack.c.l.b16 %v234
    %v491 = vunpack.c.l.b16 %v235
    %v492 = vunpack.c.l.b16 %v236
    %v493 = vunpack.c.l.b16 %v237
    %v494 = vunpack.c.l.b16 %v238
    %v495 = vunpack.c.l.b16 %v239
    %v496 = vunpack.c.l.b16 %v240
    %v497 = vunpack.c.l.b16 %v241
    %v498 = vunpack.c.l.b16 %v242
    %v499 = vpack.c.b16 %v372, %v371
    %v500 = vpack.c.b16 %v374, %v373
    %v501 = vpack.c.b16 %v376, %v375
    %v502 = vpack.c.b16 %v378, %v377
    %v503 = vpack.c.b16 %v380, %v379
    %v504 = vpack.c.b16 %v382, %v381
    %v505 = vpack.c.b16 %v384, %v383
    %v506 = vpack.c.b16 %v386, %v385
    %v507 = vpack.c.b16 %v388, %v387
    %v508 = vpack.c.b16 %v390, %v389
    %v509 = vpack.c.b16 %v392, %v391
    %v510 = vpack.c.b16 %v394, %v393
    %v511 = vpack.c.b16 %v396, %v395
    %v512 = vpack.c.b16 %v398, %v397
    %v513 = vpack.c.b16 %v400, %v399
    %v514 = vpack.c.b16 %v402, %v401
    %v515 = vpack.c.b16 %v404, %v403
    %v516 = vpack.c.b16 %v406, %v405
    %v517 = vpack.c.b16 %v408, %v407
    %v518 = vpack.c.b16 %v410, %v409
    %v519 = vpack.c.b16 %v412, %v411
    %v520 = vpack.c.b16 %v414, %v413
    %v521 = vpack.c.b16 %v416, %v415
    %v522 = vpack.c.b16 %v418, %v417
    %v523 = vpack.c.b16 %v420, %v419
    %v524 = vpack.c.b16 %v422, %v421
    %v525 = vpack.c.b16 %v424, %v423
    %v526 = vpack.c.b16 %v426, %v425
    %v527 = vpack.c.b16 %v428, %v427
    %v528 = vpack.c.b16 %v430, %v429
    %v529 = vpack.c.b16 %v432, %v431
    %v530 = vpack.c.b16 %v434, %v433
    %v531 = vpack.c.b16 %v436, %v435
    %v532 = vpack.c.b16 %v438, %v437
    %v533 = vpack.c.b16 %v440, %v439
    %v534 = vpack.c.b16 %v442, %v441
    %v535 = vpack.c.b16 %v444, %v443
    %v536 = vpack.c.b16 %v446, %v445
    %v537 = vpack.c.b16 %v448, %v447
    %v538 = vpack.c.b16 %v450, %v449
    %v539 = vpack.c.b16 %v452, %v451
    %v540 = vpack.c.b16 %v454, %v453
    %v541 = vpack.c.b16 %v456, %v455
    %v542 = vpack.c.b16 %v458, %v457
    %v543 = vpack.c.b16 %v460, %v459
    %v544 = vpack.c.b16 %v462, %v461
    %v545 = vpack.c.b16 %v464, %v463
    %v546 = vpack.c.b16 %v466, %v465
    %v547 = vpack.c.b16 %v468, %v467
    %v548 = vpack.c.b16 %v470, %v469
    %v549 = vpack.c.b16 %v472, %v471
    %v550 = vpack.c.b16 %v474, %v473
    %v551 = vpack.c.b16 %v476, %v475
    %v552 = vpack.c.b16 %v478, %v477
    %v553 = vpack.c.b16 %v480, %v479
    %v554 = vpack.c.b16 %v482, %v481
    %v555 = vpack.c.b16 %v484, %v483
    %v556 = vpack.c.b16 %v486, %v485
    %v557 = vpack.c.b16 %v488, %v487
    %v558 = vpack.c.b16 %v490, %v489
    %v559 = vpack.c.b16 %v492, %v491
    %v560 = vpack.c.b16 %v494, %v493
    %v561 = vpack.c.b16 %v496, %v495
    %v562 = vpack.c.b16 %v498, %v497
    %627 = vmatprep.subr.bf16.mxu0 0
    %628 = vmatpush1.bf16.msra.mxu0 %v499
    %629 = vmatprep.subr.bf16.mxu0 0
    %630 = vmatpush1.bf16.msra.mxu0 %v500
    %631 = vmatprep.subr.bf16.mxu0 0
    %632 = vmatpush1.bf16.msra.mxu0 %v501
    %633 = vmatprep.subr.bf16.mxu0 0
    %634 = vmatpush1.bf16.msra.mxu0 %v502
    %635 = vmatprep.subr.bf16.mxu0 0
    %636 = vmatpush1.bf16.msra.mxu0 %v503
    %637 = vmatprep.subr.bf16.mxu0 0
    %638 = vmatpush1.bf16.msra.mxu0 %v504
    %639 = vmatprep.subr.bf16.mxu0 0
    %640 = vmatpush1.bf16.msra.mxu0 %v505
    %641 = vmatprep.subr.bf16.mxu0 0
    %642 = vmatpush1.bf16.msra.mxu0 %v506
    %643 = vmatprep.subr.bf16.mxu0 0
    %644 = vmatpush1.bf16.msra.mxu0 %v507
    %645 = vmatprep.subr.bf16.mxu0 0
    %646 = vmatpush1.bf16.msra.mxu0 %v508
    %647 = vmatprep.subr.bf16.mxu0 0
    %648 = vmatpush1.bf16.msra.mxu0 %v509
    %649 = vmatprep.subr.bf16.mxu0 0
    %650 = vmatpush1.bf16.msra.mxu0 %v510
    %651 = vmatprep.subr.bf16.mxu0 0
    %652 = vmatpush1.bf16.msra.mxu0 %v511
    %653 = vmatprep.subr.bf16.mxu0 0
    %654 = vmatpush1.bf16.msra.mxu0 %v512
    %655 = vmatprep.subr.bf16.mxu0 0
    %656 = vmatpush1.bf16.msra.mxu0 %v513
    %657 = vmatprep.subr.bf16.mxu0 0
    %658 = vmatpush1.bf16.msra.mxu0 %v514
    %659 = vmatprep.mubr.bf16.mxu0 %v108
    %660 = vmatmul.mubr.bf16.gmra.mrb[0].mxu0 %v107
    %v661 = vpop.f32.mrb[0].mxu0
    %v662 = vadd.f32 0.0, %v661
    %v663 = vpop.f32.mrb[0].mxu0
    %v664 = vpop.f32.mrb[0].mxu0
    %v665 = vadd.f32 0.0, %v664
    %v666 = vpop.f32.mrb[0].mxu0
    %667 = vdwg.mxu0
    %668 = vmatprep.subr.bf16.mxu0 0
    %669 = vmatpush1.bf16.msra.mxu0 %v515
    %670 = vmatprep.subr.bf16.mxu0 0
    %671 = vmatpush1.bf16.msra.mxu0 %v516
    %672 = vmatprep.subr.bf16.mxu0 0
    %673 = vmatpush1.bf16.msra.mxu0 %v517
    %674 = vmatprep.subr.bf16.mxu0 0
    %675 = vmatpush1.bf16.msra.mxu0 %v518
    %676 = vmatprep.subr.bf16.mxu0 0
    %677 = vmatpush1.bf16.msra.mxu0 %v519
    %678 = vmatprep.subr.bf16.mxu0 0
    %679 = vmatpush1.bf16.msra.mxu0 %v520
    %680 = vmatprep.subr.bf16.mxu0 0
    %681 = vmatpush1.bf16.msra.mxu0 %v521
    %682 = vmatprep.subr.bf16.mxu0 0
    %683 = vmatpush1.bf16.msra.mxu0 %v522
    %684 = vmatprep.subr.bf16.mxu0 0
    %685 = vmatpush1.bf16.msra.mxu0 %v523
    %686 = vmatprep.subr.bf16.mxu0 0
    %687 = vmatpush1.bf16.msra.mxu0 %v524
    %688 = vmatprep.subr.bf16.mxu0 0
    %689 = vmatpush1.bf16.msra.mxu0 %v525
    %690 = vmatprep.subr.bf16.mxu0 0
    %691 = vmatpush1.bf16.msra.mxu0 %v526
    %692 = vmatprep.subr.bf16.mxu0 0
    %693 = vmatpush1.bf16.msra.mxu0 %v527
    %694 = vmatprep.subr.bf16.mxu0 0
    %695 = vmatpush1.bf16.msra.mxu0 %v528
    %696 = vmatprep.subr.bf16.mxu0 0
    %697 = vmatpush1.bf16.msra.mxu0 %v529
    %698 = vmatprep.subr.bf16.mxu0 0
    %699 = vmatpush1.bf16.msra.mxu0 %v530
    %700 = vmatprep.mubr.bf16.mxu0 %v110
    %701 = vmatmul.mubr.bf16.gmra.mrb[0].mxu0 %v109
    %v702 = vpop.f32.mrb[0].mxu0
    %v703 = vadd.f32 %v662, %v702
    %v704 = vpop.f32.mrb[0].mxu0
    %v705 = vpop.f32.mrb[0].mxu0
    %v706 = vadd.f32 %v665, %v705
    %v707 = vpop.f32.mrb[0].mxu0
    %708 = vdwg.mxu0
    %709 = vmatprep.subr.bf16.mxu0 0
    %710 = vmatpush1.bf16.msra.mxu0 %v531
    %711 = vmatprep.subr.bf16.mxu0 0
    %712 = vmatpush1.bf16.msra.mxu0 %v532
    %713 = vmatprep.subr.bf16.mxu0 0
    %714 = vmatpush1.bf16.msra.mxu0 %v533
    %715 = vmatprep.subr.bf16.mxu0 0
    %716 = vmatpush1.bf16.msra.mxu0 %v534
    %717 = vmatprep.subr.bf16.mxu0 0
    %718 = vmatpush1.bf16.msra.mxu0 %v535
    %719 = vmatprep.subr.bf16.mxu0 0
    %720 = vmatpush1.bf16.msra.mxu0 %v536
    %721 = vmatprep.subr.bf16.mxu0 0
    %722 = vmatpush1.bf16.msra.mxu0 %v537
    %723 = vmatprep.subr.bf16.mxu0 0
    %724 = vmatpush1.bf16.msra.mxu0 %v538
    %725 = vmatprep.subr.bf16.mxu0 0
    %726 = vmatpush1.bf16.msra.mxu0 %v539
    %727 = vmatprep.subr.bf16.mxu0 0
    %728 = vmatpush1.bf16.msra.mxu0 %v540
    %729 = vmatprep.subr.bf16.mxu0 0
    %730 = vmatpush1.bf16.msra.mxu0 %v541
    %731 = vmatprep.subr.bf16.mxu0 0
    %732 = vmatpush1.bf16.msra.mxu0 %v542
    %733 = vmatprep.subr.bf16.mxu0 0
    %734 = vmatpush1.bf16.msra.mxu0 %v543
    %735 = vmatprep.subr.bf16.mxu0 0
    %736 = vmatpush1.bf16.msra.mxu0 %v544
    %737 = vmatprep.subr.bf16.mxu0 0
    %738 = vmatpush1.bf16.msra.mxu0 %v545
    %739 = vmatprep.subr.bf16.mxu0 0
    %740 = vmatpush1.bf16.msra.mxu0 %v546
    %741 = vmatprep.mubr.bf16.mxu0 %v112
    %742 = vmatmul.mubr.bf16.gmra.mrb[0].mxu0 %v111
    %v743 = vpop.f32.mrb[0].mxu0
    %v744 = vadd.f32 %v703, %v743
    %v745 = vpop.f32.mrb[0].mxu0
    %v746 = vpop.f32.mrb[0].mxu0
    %v747 = vadd.f32 %v706, %v746
    %v748 = vpop.f32.mrb[0].mxu0
    %749 = vdwg.mxu0
    %750 = vmatprep.subr.bf16.mxu0 0
    %751 = vmatpush1.bf16.msra.mxu0 %v547
    %752 = vmatprep.subr.bf16.mxu0 0
    %753 = vmatpush1.bf16.msra.mxu0 %v548
    %754 = vmatprep.subr.bf16.mxu0 0
    %755 = vmatpush1.bf16.msra.mxu0 %v549
    %756 = vmatprep.subr.bf16.mxu0 0
    %757 = vmatpush1.bf16.msra.mxu0 %v550
    %758 = vmatprep.subr.bf16.mxu0 0
    %759 = vmatpush1.bf16.msra.mxu0 %v551
    %760 = vmatprep.subr.bf16.mxu0 0
    %761 = vmatpush1.bf16.msra.mxu0 %v552
    %762 = vmatprep.subr.bf16.mxu0 0
    %763 = vmatpush1.bf16.msra.mxu0 %v553
    %764 = vmatprep.subr.bf16.mxu0 0
    %765 = vmatpush1.bf16.msra.mxu0 %v554
    %766 = vmatprep.subr.bf16.mxu0 0
    %767 = vmatpush1.bf16.msra.mxu0 %v555
    %768 = vmatprep.subr.bf16.mxu0 0
    %769 = vmatpush1.bf16.msra.mxu0 %v556
    %770 = vmatprep.subr.bf16.mxu0 0
    %771 = vmatpush1.bf16.msra.mxu0 %v557
    %772 = vmatprep.subr.bf16.mxu0 0
    %773 = vmatpush1.bf16.msra.mxu0 %v558
    %774 = vmatprep.subr.bf16.mxu0 0
    %775 = vmatpush1.bf16.msra.mxu0 %v559
    %776 = vmatprep.subr.bf16.mxu0 0
    %777 = vmatpush1.bf16.msra.mxu0 %v560
    %778 = vmatprep.subr.bf16.mxu0 0
    %779 = vmatpush1.bf16.msra.mxu0 %v561
    %780 = vmatprep.subr.bf16.mxu0 0
    %781 = vmatpush1.bf16.msra.mxu0 %v562
    %782 = vmatprep.mubr.bf16.mxu0 %v114
    %783 = vmatmul.mubr.bf16.gmra.mrb[0].mxu0 %v113
    %v784 = vpop.f32.mrb[0].mxu0
    %v785 = vadd.f32 %v744, %v784
    %v786 = vpop.f32.mrb[0].mxu0
    %v787 = vpop.f32.mrb[0].mxu0
    %v788 = vadd.f32 %v747, %v787
    %v789 = vpop.f32.mrb[0].mxu0
    %790 = vdwg.mxu0
    %v791 = vadd.f32 %v89, %v785
    %v792 = vadd.f32 %v90, %v788
    %793 = vst [vmem:[#allocation2] sm:$0xff] %v791
    %794 = vst [vmem:[#allocation2 + $0x8] sm:$0xff] %v792
    // Predicated region
    $region50: #{tpu_custom_call.1} parent=1 // pred_check
      %p795 = pneg %p83
    $region51: #{tpu_custom_call.1} parent=1 // pred_check_branch
      %797 = sbr.rel (%p795) target = $region53
    $region52: #{tpu_custom_call.1} parent=1 // pred_region
      %v798 = vld [vmem:[#allocation2] sm:$0xff]
      %v799 = vld [vmem:[#allocation2 + $0x8] sm:$0xff]
      %v800 = vld [vmem:[%s2] sm:$0x1]
      %v802 = vlaneseq
      %v803 = vshrl.u32 %v802, 7
      %v804 = vsub.s32 0, %v803
      %v805 = vrot.slane %v800, %v804
      %v807 = vadd.f32 %v798, %v805
      %v808 = vadd.f32 %v799, %v805
      %v809 = vmax.f32 %v807, 0.0
      %v810 = vmax.f32 %v808, 0.0
      %v811 = vpack.c.bf16 %v810, %v809
      %v812 = vld [vmem:[#allocation8] sm:$0xf]
      %v813 = vld [vmem:[#allocation8 + $0x4] sm:$0xf]
      %v814 = vld [vmem:[#allocation8 + $0x8] sm:$0xf]
      %v815 = vld [vmem:[#allocation8 + $0xc] sm:$0xf]
      %v816 = vld [vmem:[#allocation8 + $0x10] sm:$0xf]
      %v817 = vld [vmem:[#allocation8 + $0x14] sm:$0xf]
      %v818 = vld [vmem:[#allocation8 + $0x18] sm:$0xf]
      %v819 = vld [vmem:[#allocation8 + $0x1c] sm:$0xf]
      %v820 = vld [vmem:[#allocation8 + $0x20] sm:$0xf]
      %v821 = vld [vmem:[#allocation8 + $0x24] sm:$0xf]
      %v822 = vld [vmem:[#allocation8 + $0x28] sm:$0xf]
      %v823 = vld [vmem:[#allocation8 + $0x2c] sm:$0xf]
      %v824 = vld [vmem:[#allocation8 + $0x30] sm:$0xf]
      %v825 = vld [vmem:[#allocation8 + $0x34] sm:$0xf]
      %v826 = vld [vmem:[#allocation8 + $0x38] sm:$0xf]
      %v827 = vld [vmem:[#allocation8 + $0x3c] sm:$0xf]
      %v828 = vld [vmem:[%s4] sm:$0x1]
      %v830 = vlaneseq
      %v831 = vshrl.u32 %v830, 7
      %v832 = vsub.s32 0, %v831
      %v833 = vrot.slane %v828, %v832
      %v851 = vunpack.c.l.b16 %v812
      %v852 = vunpack.c.l.b16 %v813
      %v853 = vunpack.c.l.b16 %v814
      %v854 = vunpack.c.l.b16 %v815
      %v855 = vunpack.c.l.b16 %v816
      %v856 = vunpack.c.l.b16 %v817
      %v857 = vunpack.c.l.b16 %v818
      %v858 = vunpack.c.l.b16 %v819
      %v859 = vunpack.c.l.b16 %v820
      %v860 = vunpack.c.l.b16 %v821
      %v861 = vunpack.c.l.b16 %v822
      %v862 = vunpack.c.l.b16 %v823
      %v863 = vunpack.c.l.b16 %v824
      %v864 = vunpack.c.l.b16 %v825
      %v865 = vunpack.c.l.b16 %v826
      %v866 = vunpack.c.l.b16 %v827
      %v867 = vpack.c.b16 %v852, %v851
      %v868 = vpack.c.b16 %v854, %v853
      %v869 = vpack.c.b16 %v856, %v855
      %v870 = vpack.c.b16 %v858, %v857
      %v871 = vpack.c.b16 %v860, %v859
      %v872 = vpack.c.b16 %v862, %v861
      %v873 = vpack.c.b16 %v864, %v863
      %v874 = vpack.c.b16 %v866, %v865
      %883 = vmatprep.subr.bf16.mxu0 0
      %884 = vmatpush1.bf16.msra.mxu0 %v867
      %885 = vmatprep.subr.bf16.mxu0 0
      %886 = vmatpush1.bf16.msra.mxu0 %v868
      %887 = vmatprep.subr.bf16.mxu0 0
      %888 = vmatpush1.bf16.msra.mxu0 %v869
      %889 = vmatprep.subr.bf16.mxu0 0
      %890 = vmatpush1.bf16.msra.mxu0 %v870
      %891 = vmatprep.subr.bf16.mxu0 0
      %892 = vmatpush1.bf16.msra.mxu0 %v871
      %893 = vmatprep.subr.bf16.mxu0 0
      %894 = vmatpush1.bf16.msra.mxu0 %v872
      %895 = vmatprep.subr.bf16.mxu0 0
      %896 = vmatpush1.bf16.msra.mxu0 %v873
      %897 = vmatprep.subr.bf16.mxu0 0
      %898 = vmatpush1.bf16.msra.mxu0 %v874
      %899 = vmatprep.subr.bf16.mxu0 0
      %900 = vmatpush1.bf16.msra.mxu0 0
      %901 = vmatprep.subr.bf16.mxu0 0
      %902 = vmatpush1.bf16.msra.mxu0 0
      %903 = vmatprep.subr.bf16.mxu0 0
      %904 = vmatpush1.bf16.msra.mxu0 0
      %905 = vmatprep.subr.bf16.mxu0 0
      %906 = vmatpush1.bf16.msra.mxu0 0
      %907 = vmatprep.subr.bf16.mxu0 0
      %908 = vmatpush1.bf16.msra.mxu0 0
      %909 = vmatprep.subr.bf16.mxu0 0
      %910 = vmatpush1.bf16.msra.mxu0 0
      %911 = vmatprep.subr.bf16.mxu0 0
      %912 = vmatpush1.bf16.msra.mxu0 0
      %913 = vmatprep.subr.bf16.mxu0 0
      %914 = vmatpush1.bf16.msra.mxu0 0
      %915 = vmatprep.mubr.bf16.mxu0 0
      %916 = vmatmul.mubr.bf16.gmra.mrb[0].mxu0 %v811
      %v917 = vpop.f32.mrb[0].mxu0
      %v918 = vadd.f32 %v833, %v917
      %v919 = vpop.f32.mrb[0].mxu0
      %v920 = vpop.f32.mrb[0].mxu0
      %v921 = vadd.f32 %v833, %v920
      %v922 = vpop.f32.mrb[0].mxu0
      %923 = vdwg.mxu0
      %v924 = vmax.f32 %v918, 0.0
      %v925 = vmax.f32 %v921, 0.0
      %v926 = vpack.c.bf16 %v925, %v924
      %v927 = vld [vmem:[#allocation9] sm:$0xf]
      %v928 = vld [vmem:[#allocation9 + $0x4] sm:$0xf]
      %v929 = vld [vmem:[#allocation9 + $0x8] sm:$0xf]
      %v930 = vld [vmem:[#allocation9 + $0xc] sm:$0xf]
      %v931 = vld [vmem:[#allocation9 + $0x10] sm:$0xf]
      %v932 = vld [vmem:[#allocation9 + $0x14] sm:$0xf]
      %v933 = vld [vmem:[#allocation9 + $0x18] sm:$0xf]
      %v934 = vld [vmem:[#allocation9 + $0x1c] sm:$0xf]
      %v935 = vld [vmem:[#allocation9 + $0x20] sm:$0xf]
      %v936 = vld [vmem:[#allocation9 + $0x24] sm:$0xf]
      %v937 = vld [vmem:[#allocation9 + $0x28] sm:$0xf]
      %v938 = vld [vmem:[#allocation9 + $0x2c] sm:$0xf]
      %v939 = vld [vmem:[#allocation9 + $0x30] sm:$0xf]
      %v940 = vld [vmem:[#allocation9 + $0x34] sm:$0xf]
      %v941 = vld [vmem:[#allocation9 + $0x38] sm:$0xf]
      %v942 = vld [vmem:[#allocation9 + $0x3c] sm:$0xf]
      %v943 = vld [vmem:[%s6] sm:$0x1]
      %v945 = vlaneseq
      %v946 = vshrl.u32 %v945, 7
      %v947 = vsub.s32 0, %v946
      %v948 = vrot.slane %v943, %v947
      %v966 = vunpack.c.l.b16 %v927
      %v967 = vunpack.c.l.b16 %v928
      %v968 = vunpack.c.l.b16 %v929
      %v969 = vunpack.c.l.b16 %v930
      %v970 = vunpack.c.l.b16 %v931
      %v971 = vunpack.c.l.b16 %v932
      %v972 = vunpack.c.l.b16 %v933
      %v973 = vunpack.c.l.b16 %v934
      %v974 = vunpack.c.l.b16 %v935
      %v975 = vunpack.c.l.b16 %v936
      %v976 = vunpack.c.l.b16 %v937
      %v977 = vunpack.c.l.b16 %v938
      %v978 = vunpack.c.l.b16 %v939
      %v979 = vunpack.c.l.b16 %v940
      %v980 = vunpack.c.l.b16 %v941
      %v981 = vunpack.c.l.b16 %v942
      %v982 = vpack.c.b16 %v967, %v966
      %v983 = vpack.c.b16 %v969, %v968
      %v984 = vpack.c.b16 %v971, %v970
      %v985 = vpack.c.b16 %v973, %v972
      %v986 = vpack.c.b16 %v975, %v974
      %v987 = vpack.c.b16 %v977, %v976
      %v988 = vpack.c.b16 %v979, %v978
      %v989 = vpack.c.b16 %v981, %v980
      %998 = vmatprep.subr.bf16.mxu0 0
      %999 = vmatpush1.bf16.msra.mxu0 %v982
      %1000 = vmatprep.subr.bf16.mxu0 0
      %1001 = vmatpush1.bf16.msra.mxu0 %v983
      %1002 = vmatprep.subr.bf16.mxu0 0
      %1003 = vmatpush1.bf16.msra.mxu0 %v984
      %1004 = vmatprep.subr.bf16.mxu0 0
      %1005 = vmatpush1.bf16.msra.mxu0 %v985
      %1006 = vmatprep.subr.bf16.mxu0 0
      %1007 = vmatpush1.bf16.msra.mxu0 %v986
      %1008 = vmatprep.subr.bf16.mxu0 0
      %1009 = vmatpush1.bf16.msra.mxu0 %v987
      %1010 = vmatprep.subr.bf16.mxu0 0
      %1011 = vmatpush1.bf16.msra.mxu0 %v988
      %1012 = vmatprep.subr.bf16.mxu0 0
      %1013 = vmatpush1.bf16.msra.mxu0 %v989
      %1014 = vmatprep.subr.bf16.mxu0 0
      %1015 = vmatpush1.bf16.msra.mxu0 0
      %1016 = vmatprep.subr.bf16.mxu0 0
      %1017 = vmatpush1.bf16.msra.mxu0 0
      %1018 = vmatprep.subr.bf16.mxu0 0
      %1019 = vmatpush1.bf16.msra.mxu0 0
      %1020 = vmatprep.subr.bf16.mxu0 0
      %1021 = vmatpush1.bf16.msra.mxu0 0
      %1022 = vmatprep.subr.bf16.mxu0 0
      %1023 = vmatpush1.bf16.msra.mxu0 0
      %1024 = vmatprep.subr.bf16.mxu0 0
      %1025 = vmatpush1.bf16.msra.mxu0 0
      %1026 = vmatprep.subr.bf16.mxu0 0
      %1027 = vmatpush1.bf16.msra.mxu0 0
      %1028 = vmatprep.subr.bf16.mxu0 0
      %1029 = vmatpush1.bf16.msra.mxu0 0
      %1030 = vmatprep.mubr.bf16.mxu0 0
      %1031 = vmatmul.mubr.bf16.gmra.mrb[0].mxu0 %v926
      %v1032 = vpop.f32.mrb[0].mxu0
      %v1033 = vadd.f32 %v948, %v1032
      %v1034 = vpop.f32.mrb[0].mxu0
      %v1035 = vpop.f32.mrb[0].mxu0
      %v1036 = vadd.f32 %v948, %v1035
      %v1037 = vpop.f32.mrb[0].mxu0
      %1038 = vdwg.mxu0
      %v1039 = vpack.c.bf16 %v1036, %v1033
      %v1041 = vunpack.c.l.b16 %v1039
      %v1042 = vunpack.c.h.b16 %v1039
      %v1043 = vpack.c.b16 %v1041, %v1041
      %v1044 = vpack.c.b16 %v1042, %v1042
      %1047 = vst [vmem:[#allocation11] sm:$0xf] %v1043
      %1048 = vst [vmem:[#allocation11 + $0x4] sm:$0xf] %v1044
    $region53: #{tpu_custom_call.1} parent=1 // pred_fallthru
      _
    // Predicated region
    $region54: #{tpu_custom_call.1} parent=1 // pred_check
      _
    $region55: #{tpu_custom_call.1} parent=1 // pred_check_branch
      %1050 = sbr.rel (0) target = $region57
    $region56: #{tpu_custom_call.1} parent=1 // pred_region
      %s1052 = ssub.s32 128, 128
      %1053 = vsyncadd [#allocation5], %s1052
      %s1054 = sshll.u32 [#allocation11], 4
      %s1055 = int_to_ptr.vmem [resolvable:$true] %s1054
      %1060 = dma.vmem_to_hbm [thread:$0]  %s1055, 128, %s7, [#allocation5], 64, 64, 4
    $region57: #{tpu_custom_call.1} parent=1 // pred_fallthru
      _
    // Predicated region
    $region58: #{tpu_custom_call.1} parent=1 // pred_check
      _
    $region59: #{tpu_custom_call.1} parent=1 // pred_check_branch
      %1062 = sbr.rel (0) target = $region61
    $region60: #{tpu_custom_call.1} parent=1 // pred_region
      %1063 = dma.done [#allocation5], 128
    $region61: #{tpu_custom_call.1} parent=1 // pred_fallthru
      _
    %1064 = vsyncpa [#allocation4], 1
    %1065 = vsyncpa [#allocation7], 1
    %1066 = vsyncpa [#allocation10], 1
    %1067 = vsyncpa [#allocation5], 1

// kernel: tpu_custom_call.1
$region0: #{tpu_custom_call.1}
  #allocation0 [shape = 'u32[]', space=smem, size = 0x4, offset = 0x4, fixed_abs, tag = 'smem constant byte address 0x4 - core index']
  #allocation1 [shape = 'u32[144,128]{1,0:T(1,128)}', space=vmem, size = 0x12000, scoped, tag = 'internal scratch']
  #allocation2 [shape = 'f32[16,128]{1,0:T(8,128)}', space=vmem, size = 0x2000, scoped, tag = 'scratch operand']
  %s0 = inlined_call_operand.hbm [shape: f32[16,1024], index: 0, kind: input, shape index: {}]
  %s1 = inlined_call_operand.hbm [shape: bf16[1024,128], index: 1, kind: input, shape index: {}]
  %s2 = inlined_call_operand.vmem [shape: f32[1,128], index: 2, kind: input, shape index: {}]
  %s3 = inlined_call_operand.hbm [shape: bf16[128,128], index: 3, kind: input, shape index: {}]
  %s4 = inlined_call_operand.vmem [shape: f32[1,128], index: 4, kind: input, shape index: {}]
  %s5 = inlined_call_operand.hbm [shape: bf16[128,128], index: 5, kind: input, shape index: {}]
  %s6 = inlined_call_operand.vmem [shape: f32[1,128], index: 6, kind: input, shape index: {}]
  %s7 = inlined_call_operand.hbm [shape: bf16[16,128], index: 7, kind: output, shape index: {}]
  %s8 = sld [smem:[#allocation0]]
  $region62: #{tpu_custom_call.1} parent=0
    _
  %s10 = ssub.s32 1, %s8
  %s11 = scalar_select 0, %s10, %s8
  $region1: #{tpu_custom_call.1} parent=0
    #allocation3 [shape = 'u8[65536]{0}', space=vmem, size = 0x10000, scoped, tag = 'input window, operand 0, single buffered']
    #allocation4 [shape = 's32[1]{0}', space=sflag, size = 0x4, scoped, tag = 'scoped memory for tpu_custom_call.1']
    #allocation5 [shape = 's32[1]{0}', space=sflag, size = 0x4, scoped, tag = 'scoped memory for tpu_custom_call.1']
    #allocation6 [shape = 'u8[262144]{0}', space=vmem, size = 0x40000, scoped, tag = 'input window, operand 1, single buffered']
    #allocation7 [shape = 's32[1]{0}', space=sflag, size = 0x4, scoped, tag = 'scoped memory for tpu_custom_call.1']
    #allocation8 [shape = 'u8[32768]{0}', space=vmem, size = 0x8000, scoped, tag = 'input window, operand 3, single buffered']
    #allocation9 [shape = 'u8[32768]{0}', space=vmem, size = 0x8000, scoped, tag = 'input window, operand 5, single buffered']
    #allocation10 [shape = 's32[1]{0}', space=sflag, size = 0x4, scoped, tag = 'scoped memory for tpu_custom_call.1']
    #allocation11 [shape = 'u8[4096]{0}', space=vmem, size = 0x1000, scoped, tag = 'output window, operand 0, single buffered']
    %12 = vsyncpa [#allocation4], 0
    %13 = vsyncpa [#allocation7], 0
    %14 = vsyncpa [#allocation10], 0
    %15 = vsyncpa [#allocation5], 0
    // Predicated region
    $region2: #{tpu_custom_call.1} parent=1 // pred_check
      _
    $region3: #{tpu_custom_call.1} parent=1 // pred_check_branch
      %17 = sbr.rel (0) target = $region5
    $region4: #{tpu_custom_call.1} parent=1 // pred_region
      %s19 = ssub.s32 2048, 2048
      %20 = vsyncadd [#allocation4], %s19
      %s21 = sshll.u32 [#allocation3], 4
      %s22 = int_to_ptr.vmem [resolvable:$true] %s21
      %27 = dma.hbm_to_vmem [thread:$0]  %s0, 2048, %s22, [#allocation4], 1024, 1024, 64
    $region5: #{tpu_custom_call.1} parent=1 // pred_fallthru
      _
    // Predicated region
    $region6: #{tpu_custom_call.1} parent=1 // pred_check
      _
    $region7: #{tpu_custom_call.1} parent=1 // pred_check_branch
      %29 = sbr.rel (0) target = $region9
    $region8: #{tpu_custom_call.1} parent=1 // pred_region
      %s31 = ssub.s32 8192, 8192
      %32 = vsyncadd [#allocation7], %s31
      %s33 = sshll.u32 [#allocation6], 4
      %s34 = int_to_ptr.vmem [resolvable:$true] %s33
      %39 = dma.hbm_to_vmem [thread:$0]  %s1, 8192, %s34, [#allocation7], 64, 64, 4
    $region9: #{tpu_custom_call.1} parent=1 // pred_fallthru
      _
    // Predicated region
    $region10: #{tpu_custom_call.1} parent=1 // pred_check
      _
    $region11: #{tpu_custom_call.1} parent=1 // pred_check_branch
      %41 = sbr.rel (0) target = $region13
    $region12: #{tpu_custom_call.1} parent=1 // pred_region
      _
    $region13: #{tpu_custom_call.1} parent=1 // pred_fallthru
      _
    // Predicated region
    $region14: #{tpu_custom_call.1} parent=1 // pred_check
      _
    $region15: #{tpu_custom_call.1} parent=1 // pred_check_branch
      %43 = sbr.rel (0) target = $region17
    $region16: #{tpu_custom_call.1} parent=1 // pred_region
      %s45 = ssub.s32 1024, 1024
      %46 = vsyncadd [#allocation7], %s45
      %s47 = sshll.u32 [#allocation8], 4
      %s48 = int_to_ptr.vmem [resolvable:$true] %s47
      %53 = dma.hbm_to_vmem [thread:$0]  %s3, 1024, %s48, [#allocation7], 64, 64, 4
    $region17: #{tpu_custom_call.1} parent=1 // pred_fallthru
      _
    // Predicated region
    $region18: #{tpu_custom_call.1} parent=1 // pred_check
      _
    $region19: #{tpu_custom_call.1} parent=1 // pred_check_branch
      %55 = sbr.rel (0) target = $region21
    $region20: #{tpu_custom_call.1} parent=1 // pred_region
      _
    $region21: #{tpu_custom_call.1} parent=1 // pred_fallthru
      _
    // Predicated region
    $region22: #{tpu_custom_call.1} parent=1 // pred_check
      _
    $region23: #{tpu_custom_call.1} parent=1 // pred_check_branch
      %57 = sbr.rel (0) target = $region25
    $region24: #{tpu_custom_call.1} parent=1 // pred_region
      %s59 = ssub.s32 1024, 1024
      %60 = vsyncadd [#allocation10], %s59
      %s61 = sshll.u32 [#allocation9], 4
      %s62 = int_to_ptr.vmem [resolvable:$true] %s61
      %67 = dma.hbm_to_vmem [thread:$0]  %s5, 1024, %s62, [#allocation10], 64, 64, 4
    $region25: #{tpu_custom_call.1} parent=1 // pred_fallthru
      _
    // Predicated region
    $region26: #{tpu_custom_call.1} parent=1 // pred_check
      _
    $region27: #{tpu_custom_call.1} parent=1 // pred_check_branch
      %69 = sbr.rel (0) target = $region29
    $region28: #{tpu_custom_call.1} parent=1 // pred_region
      _
    $region29: #{tpu_custom_call.1} parent=1 // pred_fallthru
      _
    // Predicated region
    $region30: #{tpu_custom_call.1} parent=1 // pred_check
      _
    $region31: #{tpu_custom_call.1} parent=1 // pred_check_branch
      %71 = sbr.rel (0) target = $region33
    $region32: #{tpu_custom_call.1} parent=1 // pred_region
      %72 = dma.done [#allocation4], 2048
    $region33: #{tpu_custom_call.1} parent=1 // pred_fallthru
      _
    // Predicated region
    $region34: #{tpu_custom_call.1} parent=1 // pred_check
      _
    $region35: #{tpu_custom_call.1} parent=1 // pred_check_branch
      %74 = sbr.rel (0) target = $region37
    $region36: #{tpu_custom_call.1} parent=1 // pred_region
      %75 = dma.done [#allocation7], 8192
    $region37: #{tpu_custom_call.1} parent=1 // pred_fallthru
      _
    // Predicated region
    $region38: #{tpu_custom_call.1} parent=1 // pred_check
      _
    $region39: #{tpu_custom_call.1} parent=1 // pred_check_branch
      %77 = sbr.rel (0) target = $region41
    $region40: #{tpu_custom_call.1} parent=1 // pred_region
      %78 = dma.done [#allocation7], 1024
    $region41: #{tpu_custom_call.1} parent=1 // pred_fallthru
      _
    // Predicated region
    $region42: #{tpu_custom_call.1} parent=1 // pred_check
      _
    $region43: #{tpu_custom_call.1} parent=1 // pred_check_branch
      %80 = sbr.rel (0) target = $region45
    $region44: #{tpu_custom_call.1} parent=1 // pred_region
      %81 = dma.done [#allocation10], 1024
    $region45: #{tpu_custom_call.1} parent=1 // pred_fallthru
      _
    %p83 = scmp.eq.s32.totalorder 0, 0
    // Predicated region
    $region46: #{tpu_custom_call.1} parent=1 // pred_check
      %p84 = pneg %p83
    $region47: #{tpu_custom_call.1} parent=1 // pred_check_branch
      %86 = sbr.rel (%p84) target = $region49
    $region48: #{tpu_custom_call.1} parent=1 // pred_region
      %87 = vst [vmem:[#allocation2] sm:$0xff] 0.0
      %88 = vst [vmem:[#allocation2 + $0x8] sm:$0xff] 0.0
    $region49: #{tpu_custom_call.1} parent=1 // pred_fallthru
      _
    %v89 = vld [vmem:[#allocation2] sm:$0xff]
    %v90 = vld [vmem:[#allocation2 + $0x8] sm:$0xff]
    %v91 = vld [vmem:[#allocation3] sm:$0xff]
    %v92 = vld [vmem:[#allocation3 + $0x8] sm:$0xff]
    %v93 = vld [vmem:[#allocation3 + $0x10] sm:$0xff]
    %v94 = vld [vmem:[#allocation3 + $0x18] sm:$0xff]
    %v95 = vld [vmem:[#allocation3 + $0x20] sm:$0xff]
    %v96 = vld [vmem:[#allocation3 + $0x28] sm:$0xff]
    %v97 = vld [vmem:[#allocation3 + $0x30] sm:$0xff]
    %v98 = vld [vmem:[#allocation3 + $0x38] sm:$0xff]
    %v99 = vld [vmem:[#allocation3 + $0x40] sm:$0xff]
    %v100 = vld [vmem:[#allocation3 + $0x48] sm:$0xff]
    %v101 = vld [vmem:[#allocation3 + $0x50] sm:$0xff]
    %v102 = vld [vmem:[#allocation3 + $0x58] sm:$0xff]
    %v103 = vld [vmem:[#allocation3 + $0x60] sm:$0xff]
    %v104 = vld [vmem:[#allocation3 + $0x68] sm:$0xff]
    %v105 = vld [vmem:[#allocation3 + $0x70] sm:$0xff]
    %v106 = vld [vmem:[#allocation3 + $0x78] sm:$0xff]
    %v107 = vpack.c.bf16 %v99, %v91
    %v108 = vpack.c.bf16 %v100, %v92
    %v109 = vpack.c.bf16 %v101, %v93
    %v110 = vpack.c.bf16 %v102, %v94
    %v111 = vpack.c.bf16 %v103, %v95
    %v112 = vpack.c.bf16 %v104, %v96
    %v113 = vpack.c.bf16 %v105, %v97
    %v114 = vpack.c.bf16 %v106, %v98
    %v115 = vld [vmem:[#allocation6] sm:$0xf]
    %v116 = vld [vmem:[#allocation6 + $0x4] sm:$0xf]
    %v117 = vld [vmem:[#allocation6 + $0x8] sm:$0xf]
    %v118 = vld [vmem:[#allocation6 + $0xc] sm:$0xf]
    %v119 = vld [vmem:[#allocation6 + $0x10] sm:$0xf]
    %v120 = vld [vmem:[#allocation6 + $0x14] sm:$0xf]
    %v121 = vld [vmem:[#allocation6 + $0x18] sm:$0xf]
    %v122 = vld [vmem:[#allocation6 + $0x1c] sm:$0xf]
    %v123 = vld [vmem:[#allocation6 + $0x20] sm:$0xf]
    %v124 = vld [vmem:[#allocation6 + $0x24] sm:$0xf]
    %v125 = vld [vmem:[#allocation6 + $0x28] sm:$0xf]
    %v126 = vld [vmem:[#allocation6 + $0x2c] sm:$0xf]
    %v127 = vld [vmem:[#allocation6 + $0x30] sm:$0xf]
    %v128 = vld [vmem:[#allocation6 + $0x34] sm:$0xf]
    %v129 = vld [vmem:[#allocation6 + $0x38] sm:$0xf]
    %v130 = vld [vmem:[#allocation6 + $0x3c] sm:$0xf]
    %v131 = vld [vmem:[#allocation6 + $0x40] sm:$0xf]
    %v132 = vld [vmem:[#allocation6 + $0x44] sm:$0xf]
    %v133 = vld [vmem:[#allocation6 + $0x48] sm:$0xf]
    %v134 = vld [vmem:[#allocation6 + $0x4c] sm:$0xf]
    %v135 = vld [vmem:[#allocation6 + $0x50] sm:$0xf]
    %v136 = vld [vmem:[#allocation6 + $0x54] sm:$0xf]
    %v137 = vld [vmem:[#allocation6 + $0x58] sm:$0xf]
    %v138 = vld [vmem:[#allocation6 + $0x5c] sm:$0xf]
    %v139 = vld [vmem:[#allocation6 + $0x60] sm:$0xf]
    %v140 = vld [vmem:[#allocation6 + $0x64] sm:$0xf]
    %v141 = vld [vmem:[#allocation6 + $0x68] sm:$0xf]
    %v142 = vld [vmem:[#allocation6 + $0x6c] sm:$0xf]
    %v143 = vld [vmem:[#allocation6 + $0x70] sm:$0xf]
    %v144 = vld [vmem:[#allocation6 + $0x74] sm:$0xf]
    %v145 = vld [vmem:[#allocation6 + $0x78] sm:$0xf]
    %v146 = vld [vmem:[#allocation6 + $0x7c] sm:$0xf]
    %v147 = vld [vmem:[#allocation6 + $0x80] sm:$0xf]
    %v148 = vld [vmem:[#allocation6 + $0x84] sm:$0xf]
    %v149 = vld [vmem:[#allocation6 + $0x88] sm:$0xf]
    %v150 = vld [vmem:[#allocation6 + $0x8c] sm:$0xf]
    %v151 = vld [vmem:[#allocation6 + $0x90] sm:$0xf]
    %v152 = vld [vmem:[#allocation6 + $0x94] sm:$0xf]
    %v153 = vld [vmem:[#allocation6 + $0x98] sm:$0xf]
    %v154 = vld [vmem:[#allocation6 + $0x9c] sm:$0xf]
    %v155 = vld [vmem:[#allocation6 + $0xa0] sm:$0xf]
    %v156 = vld [vmem:[#allocation6 + $0xa4] sm:$0xf]
    %v157 = vld [vmem:[#allocation6 + $0xa8] sm:$0xf]
    %v158 = vld [vmem:[#allocation6 + $0xac] sm:$0xf]
    %v159 = vld [vmem:[#allocation6 + $0xb0] sm:$0xf]
    %v160 = vld [vmem:[#allocation6 + $0xb4] sm:$0xf]
    %v161 = vld [vmem:[#allocation6 + $0xb8] sm:$0xf]
    %v162 = vld [vmem:[#allocation6 + $0xbc] sm:$0xf]
    %v163 = vld [vmem:[#allocation6 + $0xc0] sm:$0xf]
    %v164 = vld [vmem:[#allocation6 + $0xc4] sm:$0xf]
    %v165 = vld [vmem:[#allocation6 + $0xc8] sm:$0xf]
    %v166 = vld [vmem:[#allocation6 + $0xcc] sm:$0xf]
    %v167 = vld [vmem:[#allocation6 + $0xd0] sm:$0xf]
    %v168 = vld [vmem:[#allocation6 + $0xd4] sm:$0xf]
    %v169 = vld [vmem:[#allocation6 + $0xd8] sm:$0xf]
    %v170 = vld [vmem:[#allocation6 + $0xdc] sm:$0xf]
    %v171 = vld [vmem:[#allocation6 + $0xe0] sm:$0xf]
    %v172 = vld [vmem:[#allocation6 + $0xe4] sm:$0xf]
    %v173 = vld [vmem:[#allocation6 + $0xe8] sm:$0xf]
    %v174 = vld [vmem:[#allocation6 + $0xec] sm:$0xf]
    %v175 = vld [vmem:[#allocation6 + $0xf0] sm:$0xf]
    %v176 = vld [vmem:[#allocation6 + $0xf4] sm:$0xf]
    %v177 = vld [vmem:[#allocation6 + $0xf8] sm:$0xf]
    %v178 = vld [vmem:[#allocation6 + $0xfc] sm:$0xf]
    %v179 = vld [vmem:[#allocation6 + $0x100] sm:$0xf]
    %v180 = vld [vmem:[#allocation6 + $0x104] sm:$0xf]
    %v181 = vld [vmem:[#allocation6 + $0x108] sm:$0xf]
    %v182 = vld [vmem:[#allocation6 + $0x10c] sm:$0xf]
    %v183 = vld [vmem:[#allocation6 + $0x110] sm:$0xf]
    %v184 = vld [vmem:[#allocation6 + $0x114] sm:$0xf]
    %v185 = vld [vmem:[#allocation6 + $0x118] sm:$0xf]
    %v186 = vld [vmem:[#allocation6 + $0x11c] sm:$0xf]
    %v187 = vld [vmem:[#allocation6 + $0x120] sm:$0xf]
    %v188 = vld [vmem:[#allocation6 + $0x124] sm:$0xf]
    %v189 = vld [vmem:[#allocation6 + $0x128] sm:$0xf]
    %v190 = vld [vmem:[#allocation6 + $0x12c] sm:$0xf]
    %v191 = vld [vmem:[#allocation6 + $0x130] sm:$0xf]
    %v192 = vld [vmem:[#allocation6 + $0x134] sm:$0xf]
    %v193 = vld [vmem:[#allocation6 + $0x138] sm:$0xf]
    %v194 = vld [vmem:[#allocation6 + $0x13c] sm:$0xf]
    %v195 = vld [vmem:[#allocation6 + $0x140] sm:$0xf]
    %v196 = vld [vmem:[#allocation6 + $0x144] sm:$0xf]
    %v197 = vld [vmem:[#allocation6 + $0x148] sm:$0xf]
    %v198 = vld [vmem:[#allocation6 + $0x14c] sm:$0xf]
    %v199 = vld [vmem:[#allocation6 + $0x150] sm:$0xf]
    %v200 = vld [vmem:[#allocation6 + $0x154] sm:$0xf]
    %v201 = vld [vmem:[#allocation6 + $0x158] sm:$0xf]
    %v202 = vld [vmem:[#allocation6 + $0x15c] sm:$0xf]
    %v203 = vld [vmem:[#allocation6 + $0x160] sm:$0xf]
    %v204 = vld [vmem:[#allocation6 + $0x164] sm:$0xf]
    %v205 = vld [vmem:[#allocation6 + $0x168] sm:$0xf]
    %v206 = vld [vmem:[#allocation6 + $0x16c] sm:$0xf]
    %v207 = vld [vmem:[#allocation6 + $0x170] sm:$0xf]
    %v208 = vld [vmem:[#allocation6 + $0x174] sm:$0xf]
    %v209 = vld [vmem:[#allocation6 + $0x178] sm:$0xf]
    %v210 = vld [vmem:[#allocation6 + $0x17c] sm:$0xf]
    %v211 = vld [vmem:[#allocation6 + $0x180] sm:$0xf]
    %v212 = vld [vmem:[#allocation6 + $0x184] sm:$0xf]
    %v213 = vld [vmem:[#allocation6 + $0x188] sm:$0xf]
    %v214 = vld [vmem:[#allocation6 + $0x18c] sm:$0xf]
    %v215 = vld [vmem:[#allocation6 + $0x190] sm:$0xf]
    %v216 = vld [vmem:[#allocation6 + $0x194] sm:$0xf]
    %v217 = vld [vmem:[#allocation6 + $0x198] sm:$0xf]
    %v218 = vld [vmem:[#allocation6 + $0x19c] sm:$0xf]
    %v219 = vld [vmem:[#allocation6 + $0x1a0] sm:$0xf]
    %v220 = vld [vmem:[#allocation6 + $0x1a4] sm:$0xf]
    %v221 = vld [vmem:[#allocation6 + $0x1a8] sm:$0xf]
    %v222 = vld [vmem:[#allocation6 + $0x1ac] sm:$0xf]
    %v223 = vld [vmem:[#allocation6 + $0x1b0] sm:$0xf]
    %v224 = vld [vmem:[#allocation6 + $0x1b4] sm:$0xf]
    %v225 = vld [vmem:[#allocation6 + $0x1b8] sm:$0xf]
    %v226 = vld [vmem:[#allocation6 + $0x1bc] sm:$0xf]
    %v227 = vld [vmem:[#allocation6 + $0x1c0] sm:$0xf]
    %v228 = vld [vmem:[#allocation6 + $0x1c4] sm:$0xf]
    %v229 = vld [vmem:[#allocation6 + $0x1c8] sm:$0xf]
    %v230 = vld [vmem:[#allocation6 + $0x1cc] sm:$0xf]
    %v231 = vld [vmem:[#allocation6 + $0x1d0] sm:$0xf]
    %v232 = vld [vmem:[#allocation6 + $0x1d4] sm:$0xf]
    %v233 = vld [vmem:[#allocation6 + $0x1d8] sm:$0xf]
    %v234 = vld [vmem:[#allocation6 + $0x1dc] sm:$0xf]
    %v235 = vld [vmem:[#allocation6 + $0x1e0] sm:$0xf]
    %v236 = vld [vmem:[#allocation6 + $0x1e4] sm:$0xf]
    %v237 = vld [vmem:[#allocation6 + $0x1e8] sm:$0xf]
    %v238 = vld [vmem:[#allocation6 + $0x1ec] sm:$0xf]
    %v239 = vld [vmem:[#allocation6 + $0x1f0] sm:$0xf]
    %v240 = vld [vmem:[#allocation6 + $0x1f4] sm:$0xf]
    %v241 = vld [vmem:[#allocation6 + $0x1f8] sm:$0xf]
    %v242 = vld [vmem:[#allocation6 + $0x1fc] sm:$0xf]
    %v371 = vunpack.c.l.b16 %v115
    %v372 = vunpack.c.l.b16 %v116
    %v373 = vunpack.c.l.b16 %v117
    %v374 = vunpack.c.l.b16 %v118
    %v375 = vunpack.c.l.b16 %v119
    %v376 = vunpack.c.l.b16 %v120
    %v377 = vunpack.c.l.b16 %v121
    %v378 = vunpack.c.l.b16 %v122
    %v379 = vunpack.c.l.b16 %v123
    %v380 = vunpack.c.l.b16 %v124
    %v381 = vunpack.c.l.b16 %v125
    %v382 = vunpack.c.l.b16 %v126
    %v383 = vunpack.c.l.b16 %v127
    %v384 = vunpack.c.l.b16 %v128
    %v385 = vunpack.c.l.b16 %v129
    %v386 = vunpack.c.l.b16 %v130
    %v387 = vunpack.c.l.b16 %v131
    %v388 = vunpack.c.l.b16 %v132
    %v389 = vunpack.c.l.b16 %v133
    %v390 = vunpack.c.l.b16 %v134
    %v391 = vunpack.c.l.b16 %v135
    %v392 = vunpack.c.l.b16 %v136
    %v393 = vunpack.c.l.b16 %v137
    %v394 = vunpack.c.l.b16 %v138
    %v395 = vunpack.c.l.b16 %v139
    %v396 = vunpack.c.l.b16 %v140
    %v397 = vunpack.c.l.b16 %v141
    %v398 = vunpack.c.l.b16 %v142
    %v399 = vunpack.c.l.b16 %v143
    %v400 = vunpack.c.l.b16 %v144
    %v401 = vunpack.c.l.b16 %v145
    %v402 = vunpack.c.l.b16 %v146
    %v403 = vunpack.c.l.b16 %v147
    %v404 = vunpack.c.l.b16 %v148
    %v405 = vunpack.c.l.b16 %v149
    %v406 = vunpack.c.l.b16 %v150
    %v407 = vunpack.c.l.b16 %v151
    %v408 = vunpack.c.l.b16 %v152
    %v409 = vunpack.c.l.b16 %v153
    %v410 = vunpack.c.l.b16 %v154
    %v411 = vunpack.c.l.b16 %v155
    %v412 = vunpack.c.l.b16 %v156
    %v413 = vunpack.c.l.b16 %v157
    %v414 = vunpack.c.l.b16 %v158
    %v415 = vunpack.c.l.b16 %v159
    %v416 = vunpack.c.l.b16 %v160
    %v417 = vunpack.c.l.b16 %v161
    %v418 = vunpack.c.l.b16 %v162
    %v419 = vunpack.c.l.b16 %v163
    %v420 = vunpack.c.l.b16 %v164
    %v421 = vunpack.c.l.b16 %v165
    %v422 = vunpack.c.l.b16 %v166
    %v423 = vunpack.c.l.b16 %v167
    %v424 = vunpack.c.l.b16 %v168
    %v425 = vunpack.c.l.b16 %v169
    %v426 = vunpack.c.l.b16 %v170
    %v427 = vunpack.c.l.b16 %v171
    %v428 = vunpack.c.l.b16 %v172
    %v429 = vunpack.c.l.b16 %v173
    %v430 = vunpack.c.l.b16 %v174
    %v431 = vunpack.c.l.b16 %v175
    %v432 = vunpack.c.l.b16 %v176
    %v433 = vunpack.c.l.b16 %v177
    %v434 = vunpack.c.l.b16 %v178
    %v435 = vunpack.c.l.b16 %v179
    %v436 = vunpack.c.l.b16 %v180
    %v437 = vunpack.c.l.b16 %v181
    %v438 = vunpack.c.l.b16 %v182
    %v439 = vunpack.c.l.b16 %v183
    %v440 = vunpack.c.l.b16 %v184
    %v441 = vunpack.c.l.b16 %v185
    %v442 = vunpack.c.l.b16 %v186
    %v443 = vunpack.c.l.b16 %v187
    %v444 = vunpack.c.l.b16 %v188
    %v445 = vunpack.c.l.b16 %v189
    %v446 = vunpack.c.l.b16 %v190
    %v447 = vunpack.c.l.b16 %v191
    %v448 = vunpack.c.l.b16 %v192
    %v449 = vunpack.c.l.b16 %v193
    %v450 = vunpack.c.l.b16 %v194
    %v451 = vunpack.c.l.b16 %v195
    %v452 = vunpack.c.l.b16 %v196
    %v453 = vunpack.c.l.b16 %v197
    %v454 = vunpack.c.l.b16 %v198
    %v455 = vunpack.c.l.b16 %v199
    %v456 = vunpack.c.l.b16 %v200
    %v457 = vunpack.c.l.b16 %v201
    %v458 = vunpack.c.l.b16 %v202
    %v459 = vunpack.c.l.b16 %v203
    %v460 = vunpack.c.l.b16 %v204
    %v461 = vunpack.c.l.b16 %v205
    %v462 = vunpack.c.l.b16 %v206
    %v463 = vunpack.c.l.b16 %v207
    %v464 = vunpack.c.l.b16 %v208
    %v465 = vunpack.c.l.b16 %v209
    %v466 = vunpack.c.l.b16 %v210
    %v467 = vunpack.c.l.b16 %v211
    %v468 = vunpack.c.l.b16 %v212
    %v469 = vunpack.c.l.b16 %v213
    %v470 = vunpack.c.l.b16 %v214
    %v471 = vunpack.c.l.b16 %v215
    %v472 = vunpack.c.l.b16 %v216
    %v473 = vunpack.c.l.b16 %v217
    %v474 = vunpack.c.l.b16 %v218
    %v475 = vunpack.c.l.b16 %v219
    %v476 = vunpack.c.l.b16 %v220
    %v477 = vunpack.c.l.b16 %v221
    %v478 = vunpack.c.l.b16 %v222
    %v479 = vunpack.c.l.b16 %v223
    %v480 = vunpack.c.l.b16 %v224
    %v481 = vunpack.c.l.b16 %v225
    %v482 = vunpack.c.l.b16 %v226
    %v483 = vunpack.c.l.b16 %v227
    %v484 = vunpack.c.l.b16 %v228
    %v485 = vunpack.c.l.b16 %v229
    %v486 = vunpack.c.l.b16 %v230
    %v487 = vunpack.c.l.b16 %v231
    %v488 = vunpack.c.l.b16 %v232
    %v489 = vunpack.c.l.b16 %v233
    %v490 = vunpack.c.l.b16 %v234
    %v491 = vunpack.c.l.b16 %v235
    %v492 = vunpack.c.l.b16 %v236
    %v493 = vunpack.c.l.b16 %v237
    %v494 = vunpack.c.l.b16 %v238
    %v495 = vunpack.c.l.b16 %v239
    %v496 = vunpack.c.l.b16 %v240
    %v497 = vunpack.c.l.b16 %v241
    %v498 = vunpack.c.l.b16 %v242
    %v499 = vpack.c.b16 %v372, %v371
    %v500 = vpack.c.b16 %v374, %v373
    %v501 = vpack.c.b16 %v376, %v375
    %v502 = vpack.c.b16 %v378, %v377
    %v503 = vpack.c.b16 %v380, %v379
    %v504 = vpack.c.b16 %v382, %v381
    %v505 = vpack.c.b16 %v384, %v383
    %v506 = vpack.c.b16 %v386, %v385
    %v507 = vpack.c.b16 %v388, %v387
    %v508 = vpack.c.b16 %v390, %v389
    %v509 = vpack.c.b16 %v392, %v391
    %v510 = vpack.c.b16 %v394, %v393
    %v511 = vpack.c.b16 %v396, %v395
    %v512 = vpack.c.b16 %v398, %v397
    %v513 = vpack.c.b16 %v400, %v399
    %v514 = vpack.c.b16 %v402, %v401
    %v515 = vpack.c.b16 %v404, %v403
    %v516 = vpack.c.b16 %v406, %v405
    %v517 = vpack.c.b16 %v408, %v407
    %v518 = vpack.c.b16 %v410, %v409
    %v519 = vpack.c.b16 %v412, %v411
    %v520 = vpack.c.b16 %v414, %v413
    %v521 = vpack.c.b16 %v416, %v415
    %v522 = vpack.c.b16 %v418, %v417
    %v523 = vpack.c.b16 %v420, %v419
    %v524 = vpack.c.b16 %v422, %v421
    %v525 = vpack.c.b16 %v424, %v423
    %v526 = vpack.c.b16 %v426, %v425
    %v527 = vpack.c.b16 %v428, %v427
    %v528 = vpack.c.b16 %v430, %v429
    %v529 = vpack.c.b16 %v432, %v431
    %v530 = vpack.c.b16 %v434, %v433
    %v531 = vpack.c.b16 %v436, %v435
    %v532 = vpack.c.b16 %v438, %v437
    %v533 = vpack.c.b16 %v440, %v439
    %v534 = vpack.c.b16 %v442, %v441
    %v535 = vpack.c.b16 %v444, %v443
    %v536 = vpack.c.b16 %v446, %v445
    %v537 = vpack.c.b16 %v448, %v447
    %v538 = vpack.c.b16 %v450, %v449
    %v539 = vpack.c.b16 %v452, %v451
    %v540 = vpack.c.b16 %v454, %v453
    %v541 = vpack.c.b16 %v456, %v455
    %v542 = vpack.c.b16 %v458, %v457
    %v543 = vpack.c.b16 %v460, %v459
    %v544 = vpack.c.b16 %v462, %v461
    %v545 = vpack.c.b16 %v464, %v463
    %v546 = vpack.c.b16 %v466, %v465
    %v547 = vpack.c.b16 %v468, %v467
    %v548 = vpack.c.b16 %v470, %v469
    %v549 = vpack.c.b16 %v472, %v471
    %v550 = vpack.c.b16 %v474, %v473
    %v551 = vpack.c.b16 %v476, %v475
    %v552 = vpack.c.b16 %v478, %v477
    %v553 = vpack.c.b16 %v480, %v479
    %v554 = vpack.c.b16 %v482, %v481
    %v555 = vpack.c.b16 %v484, %v483
    %v556 = vpack.c.b16 %v486, %v485
    %v557 = vpack.c.b16 %v488, %v487
    %v558 = vpack.c.b16 %v490, %v489
    %v559 = vpack.c.b16 %v492, %v491
    %v560 = vpack.c.b16 %v494, %v493
    %v561 = vpack.c.b16 %v496, %v495
    %v562 = vpack.c.b16 %v498, %v497
    %627 = vmatprep.subr.bf16.mxu0 0
    %628 = vmatpush1.bf16.msra.mxu0 %v499
    %629 = vmatprep.subr.bf16.mxu0 0
    %630 = vmatpush1.bf16.msra.mxu0 %v500
    %631 = vmatprep.subr.bf16.mxu0 0
    %632 = vmatpush1.bf16.msra.mxu0 %v501
    %633 = vmatprep.subr.bf16.mxu0 0
    %634 = vmatpush1.bf16.msra.mxu0 %v502
    %635 = vmatprep.subr.bf16.mxu0 0
    %636 = vmatpush1.bf16.msra.mxu0 %v503
    %637 = vmatprep.subr.bf16.mxu0 0
    %638 = vmatpush1.bf16.msra.mxu0 %v504
    %639 = vmatprep.subr.bf16.mxu0 0
    %640 = vmatpush1.bf16.msra.mxu0 %v505
    %641 = vmatprep.subr.bf16.mxu0 0
    %642 = vmatpush1.bf16.msra.mxu0 %v506
    %643 = vmatprep.subr.bf16.mxu0 0
    %644 = vmatpush1.bf16.msra.mxu0 %v507
    %645 = vmatprep.subr.bf16.mxu0 0
    %646 = vmatpush1.bf16.msra.mxu0 %v508
    %647 = vmatprep.subr.bf16.mxu0 0
    %648 = vmatpush1.bf16.msra.mxu0 %v509
    %649 = vmatprep.subr.bf16.mxu0 0
    %650 = vmatpush1.bf16.msra.mxu0 %v510
    %651 = vmatprep.subr.bf16.mxu0 0
    %652 = vmatpush1.bf16.msra.mxu0 %v511
    %653 = vmatprep.subr.bf16.mxu0 0
    %654 = vmatpush1.bf16.msra.mxu0 %v512
    %655 = vmatprep.subr.bf16.mxu0 0
    %656 = vmatpush1.bf16.msra.mxu0 %v513
    %657 = vmatprep.subr.bf16.mxu0 0
    %658 = vmatpush1.bf16.msra.mxu0 %v514
    %659 = vmatprep.mubr.bf16.mxu0 %v108
    %660 = vmatmul.mubr.bf16.gmra.mrb[0].mxu0 %v107
    %v661 = vpop.f32.mrb[0].mxu0
    %v662 = vadd.f32 0.0, %v661
    %v663 = vpop.f32.mrb[0].mxu0
    %v664 = vpop.f32.mrb[0].mxu0
    %v665 = vadd.f32 0.0, %v664
    %v666 = vpop.f32.mrb[0].mxu0
    %667 = vdwg.mxu0
    %668 = vmatprep.subr.bf16.mxu0 0
    %669 = vmatpush1.bf16.msra.mxu0 %v515
    %670 = vmatprep.subr.bf16.mxu0 0
    %671 = vmatpush1.bf16.msra.mxu0 %v516
    %672 = vmatprep.subr.bf16.mxu0 0
    %673 = vmatpush1.bf16.msra.mxu0 %v517
    %674 = vmatprep.subr.bf16.mxu0 0
    %675 = vmatpush1.bf16.msra.mxu0 %v518
    %676 = vmatprep.subr.bf16.mxu0 0
    %677 = vmatpush1.bf16.msra.mxu0 %v519
    %678 = vmatprep.subr.bf16.mxu0 0
    %679 = vmatpush1.bf16.msra.mxu0 %v520
    %680 = vmatprep.subr.bf16.mxu0 0
    %681 = vmatpush1.bf16.msra.mxu0 %v521
    %682 = vmatprep.subr.bf16.mxu0 0
    %683 = vmatpush1.bf16.msra.mxu0 %v522
    %684 = vmatprep.subr.bf16.mxu0 0
    %685 = vmatpush1.bf16.msra.mxu0 %v523
    %686 = vmatprep.subr.bf16.mxu0 0
    %687 = vmatpush1.bf16.msra.mxu0 %v524
    %688 = vmatprep.subr.bf16.mxu0 0
    %689 = vmatpush1.bf16.msra.mxu0 %v525
    %690 = vmatprep.subr.bf16.mxu0 0
    %691 = vmatpush1.bf16.msra.mxu0 %v526
    %692 = vmatprep.subr.bf16.mxu0 0
    %693 = vmatpush1.bf16.msra.mxu0 %v527
    %694 = vmatprep.subr.bf16.mxu0 0
    %695 = vmatpush1.bf16.msra.mxu0 %v528
    %696 = vmatprep.subr.bf16.mxu0 0
    %697 = vmatpush1.bf16.msra.mxu0 %v529
    %698 = vmatprep.subr.bf16.mxu0 0
    %699 = vmatpush1.bf16.msra.mxu0 %v530
    %700 = vmatprep.mubr.bf16.mxu0 %v110
    %701 = vmatmul.mubr.bf16.gmra.mrb[0].mxu0 %v109
    %v702 = vpop.f32.mrb[0].mxu0
    %v703 = vadd.f32 %v662, %v702
    %v704 = vpop.f32.mrb[0].mxu0
    %v705 = vpop.f32.mrb[0].mxu0
    %v706 = vadd.f32 %v665, %v705
    %v707 = vpop.f32.mrb[0].mxu0
    %708 = vdwg.mxu0
    %709 = vmatprep.subr.bf16.mxu0 0
    %710 = vmatpush1.bf16.msra.mxu0 %v531
    %711 = vmatprep.subr.bf16.mxu0 0
    %712 = vmatpush1.bf16.msra.mxu0 %v532
    %713 = vmatprep.subr.bf16.mxu0 0
    %714 = vmatpush1.bf16.msra.mxu0 %v533
    %715 = vmatprep.subr.bf16.mxu0 0
    %716 = vmatpush1.bf16.msra.mxu0 %v534
    %717 = vmatprep.subr.bf16.mxu0 0
    %718 = vmatpush1.bf16.msra.mxu0 %v535
    %719 = vmatprep.subr.bf16.mxu0 0
    %720 = vmatpush1.bf16.msra.mxu0 %v536
    %721 = vmatprep.subr.bf16.mxu0 0
    %722 = vmatpush1.bf16.msra.mxu0 %v537
    %723 = vmatprep.subr.bf16.mxu0 0
    %724 = vmatpush1.bf16.msra.mxu0 %v538
    %725 = vmatprep.subr.bf16.mxu0 0
    %726 = vmatpush1.bf16.msra.mxu0 %v539
    %727 = vmatprep.subr.bf16.mxu0 0
    %728 = vmatpush1.bf16.msra.mxu0 %v540
    %729 = vmatprep.subr.bf16.mxu0 0
    %730 = vmatpush1.bf16.msra.mxu0 %v541
    %731 = vmatprep.subr.bf16.mxu0 0
    %732 = vmatpush1.bf16.msra.mxu0 %v542
    %733 = vmatprep.subr.bf16.mxu0 0
    %734 = vmatpush1.bf16.msra.mxu0 %v543
    %735 = vmatprep.subr.bf16.mxu0 0
    %736 = vmatpush1.bf16.msra.mxu0 %v544
    %737 = vmatprep.subr.bf16.mxu0 0
    %738 = vmatpush1.bf16.msra.mxu0 %v545
    %739 = vmatprep.subr.bf16.mxu0 0
    %740 = vmatpush1.bf16.msra.mxu0 %v546
    %741 = vmatprep.mubr.bf16.mxu0 %v112
    %742 = vmatmul.mubr.bf16.gmra.mrb[0].mxu0 %v111
    %v743 = vpop.f32.mrb[0].mxu0
    %v744 = vadd.f32 %v703, %v743
    %v745 = vpop.f32.mrb[0].mxu0
    %v746 = vpop.f32.mrb[0].mxu0
    %v747 = vadd.f32 %v706, %v746
    %v748 = vpop.f32.mrb[0].mxu0
    %749 = vdwg.mxu0
    %750 = vmatprep.subr.bf16.mxu0 0
    %751 = vmatpush1.bf16.msra.mxu0 %v547
    %752 = vmatprep.subr.bf16.mxu0 0
    %753 = vmatpush1.bf16.msra.mxu0 %v548
    %754 = vmatprep.subr.bf16.mxu0 0
    %755 = vmatpush1.bf16.msra.mxu0 %v549
    %756 = vmatprep.subr.bf16.mxu0 0
    %757 = vmatpush1.bf16.msra.mxu0 %v550
    %758 = vmatprep.subr.bf16.mxu0 0
    %759 = vmatpush1.bf16.msra.mxu0 %v551
    %760 = vmatprep.subr.bf16.mxu0 0
    %761 = vmatpush1.bf16.msra.mxu0 %v552
    %762 = vmatprep.subr.bf16.mxu0 0
    %763 = vmatpush1.bf16.msra.mxu0 %v553
    %764 = vmatprep.subr.bf16.mxu0 0
    %765 = vmatpush1.bf16.msra.mxu0 %v554
    %766 = vmatprep.subr.bf16.mxu0 0
    %767 = vmatpush1.bf16.msra.mxu0 %v555
    %768 = vmatprep.subr.bf16.mxu0 0
    %769 = vmatpush1.bf16.msra.mxu0 %v556
    %770 = vmatprep.subr.bf16.mxu0 0
    %771 = vmatpush1.bf16.msra.mxu0 %v557
    %772 = vmatprep.subr.bf16.mxu0 0
    %773 = vmatpush1.bf16.msra.mxu0 %v558
    %774 = vmatprep.subr.bf16.mxu0 0
    %775 = vmatpush1.bf16.msra.mxu0 %v559
    %776 = vmatprep.subr.bf16.mxu0 0
    %777 = vmatpush1.bf16.msra.mxu0 %v560
    %778 = vmatprep.subr.bf16.mxu0 0
    %779 = vmatpush1.bf16.msra.mxu0 %v561
    %780 = vmatprep.subr.bf16.mxu0 0
    %781 = vmatpush1.bf16.msra.mxu0 %v562
    %782 = vmatprep.mubr.bf16.mxu0 %v114
    %783 = vmatmul.mubr.bf16.gmra.mrb[0].mxu0 %v113
    %v784 = vpop.f32.mrb[0].mxu0
    %v785 = vadd.f32 %v744, %v784
    %v786 = vpop.f32.mrb[0].mxu0
    %v787 = vpop.f32.mrb[0].mxu0
    %v788 = vadd.f32 %v747, %v787
    %v789 = vpop.f32.mrb[0].mxu0
    %790 = vdwg.mxu0
    %v791 = vadd.f32 %v89, %v785
    %v792 = vadd.f32 %v90, %v788
    %793 = vst [vmem:[#allocation2] sm:$0xff] %v791
    %794 = vst [vmem:[#allocation2 + $0x8] sm:$0xff] %v792
    // Predicated region
    $region50: #{tpu_custom_call.1} parent=1 // pred_check
      %p795 = pneg %p83
    $region51: #{tpu_custom_call.1} parent=1 // pred_check_branch
      %797 = sbr.rel (%p795) target = $region53
    $region52: #{tpu_custom_call.1} parent=1 // pred_region
      %v798 = vld [vmem:[#allocation2] sm:$0xff]
      %v799 = vld [vmem:[#allocation2 + $0x8] sm:$0xff]
      %v800 = vld [vmem:[%s2] sm:$0x1]
      %v802 = vlaneseq
      %v803 = vshrl.u32 %v802, 7
      %v804 = vsub.s32 0, %v803
      %v805 = vrot.slane %v800, %v804
      %v807 = vadd.f32 %v798, %v805
      %v808 = vadd.f32 %v799, %v805
      %v809 = vmax.f32 %v807, 0.0
      %v810 = vmax.f32 %v808, 0.0
      %v811 = vpack.c.bf16 %v810, %v809
      %v812 = vld [vmem:[#allocation8] sm:$0xf]
      %v813 = vld [vmem:[#allocation8 + $0x4] sm:$0xf]
      %v814 = vld [vmem:[#allocation8 + $0x8] sm:$0xf]
      %v815 = vld [vmem:[#allocation8 + $0xc] sm:$0xf]
      %v816 = vld [vmem:[#allocation8 + $0x10] sm:$0xf]
      %v817 = vld [vmem:[#allocation8 + $0x14] sm:$0xf]
      %v818 = vld [vmem:[#allocation8 + $0x18] sm:$0xf]
      %v819 = vld [vmem:[#allocation8 + $0x1c] sm:$0xf]
      %v820 = vld [vmem:[#allocation8 + $0x20] sm:$0xf]
      %v821 = vld [vmem:[#allocation8 + $0x24] sm:$0xf]
      %v822 = vld [vmem:[#allocation8 + $0x28] sm:$0xf]
      %v823 = vld [vmem:[#allocation8 + $0x2c] sm:$0xf]
      %v824 = vld [vmem:[#allocation8 + $0x30] sm:$0xf]
      %v825 = vld [vmem:[#allocation8 + $0x34] sm:$0xf]
      %v826 = vld [vmem:[#allocation8 + $0x38] sm:$0xf]
      %v827 = vld [vmem:[#allocation8 + $0x3c] sm:$0xf]
      %v828 = vld [vmem:[%s4] sm:$0x1]
      %v830 = vlaneseq
      %v831 = vshrl.u32 %v830, 7
      %v832 = vsub.s32 0, %v831
      %v833 = vrot.slane %v828, %v832
      %v851 = vunpack.c.l.b16 %v812
      %v852 = vunpack.c.l.b16 %v813
      %v853 = vunpack.c.l.b16 %v814
      %v854 = vunpack.c.l.b16 %v815
      %v855 = vunpack.c.l.b16 %v816
      %v856 = vunpack.c.l.b16 %v817
      %v857 = vunpack.c.l.b16 %v818
      %v858 = vunpack.c.l.b16 %v819
      %v859 = vunpack.c.l.b16 %v820
      %v860 = vunpack.c.l.b16 %v821
      %v861 = vunpack.c.l.b16 %v822
      %v862 = vunpack.c.l.b16 %v823
      %v863 = vunpack.c.l.b16 %v824
      %v864 = vunpack.c.l.b16 %v825
      %v865 = vunpack.c.l.b16 %v826
      %v866 = vunpack.c.l.b16 %v827
      %v867 = vpack.c.b16 %v852, %v851
      %v868 = vpack.c.b16 %v854, %v853
      %v869 = vpack.c.b16 %v856, %v855
      %v870 = vpack.c.b16 %v858, %v857
      %v871 = vpack.c.b16 %v860, %v859
      %v872 = vpack.c.b16 %v862, %v861
      %v873 = vpack.c.b16 %v864, %v863
      %v874 = vpack.c.b16 %v866, %v865
      %883 = vmatprep.subr.bf16.mxu0 0
      %884 = vmatpush1.bf16.msra.mxu0 %v867
      %885 = vmatprep.subr.bf16.mxu0 0
      %886 = vmatpush1.bf16.msra.mxu0 %v868
      %887 = vmatprep.subr.bf16.mxu0 0
      %888 = vmatpush1.bf16.msra.mxu0 %v869
      %889 = vmatprep.subr.bf16.mxu0 0
      %890 = vmatpush1.bf16.msra.mxu0 %v870
      %891 = vmatprep.subr.bf16.mxu0 0
      %892 = vmatpush1.bf16.msra.mxu0 %v871
      %893 = vmatprep.subr.bf16.mxu0 0
      %894 = vmatpush1.bf16.msra.mxu0 %v872
      %895 = vmatprep.subr.bf16.mxu0 0
      %896 = vmatpush1.bf16.msra.mxu0 %v873
      %897 = vmatprep.subr.bf16.mxu0 0
      %898 = vmatpush1.bf16.msra.mxu0 %v874
      %899 = vmatprep.subr.bf16.mxu0 0
      %900 = vmatpush1.bf16.msra.mxu0 0
      %901 = vmatprep.subr.bf16.mxu0 0
      %902 = vmatpush1.bf16.msra.mxu0 0
      %903 = vmatprep.subr.bf16.mxu0 0
      %904 = vmatpush1.bf16.msra.mxu0 0
      %905 = vmatprep.subr.bf16.mxu0 0
      %906 = vmatpush1.bf16.msra.mxu0 0
      %907 = vmatprep.subr.bf16.mxu0 0
      %908 = vmatpush1.bf16.msra.mxu0 0
      %909 = vmatprep.subr.bf16.mxu0 0
      %910 = vmatpush1.bf16.msra.mxu0 0
      %911 = vmatprep.subr.bf16.mxu0 0
      %912 = vmatpush1.bf16.msra.mxu0 0
      %913 = vmatprep.subr.bf16.mxu0 0
      %914 = vmatpush1.bf16.msra.mxu0 0
      %915 = vmatprep.mubr.bf16.mxu0 0
      %916 = vmatmul.mubr.bf16.gmra.mrb[0].mxu0 %v811
      %v917 = vpop.f32.mrb[0].mxu0
      %v918 = vadd.f32 %v833, %v917
      %v919 = vpop.f32.mrb[0].mxu0
      %v920 = vpop.f32.mrb[0].mxu0
      %v921 = vadd.f32 %v833, %v920
      %v922 = vpop.f32.mrb[0].mxu0
      %923 = vdwg.mxu0
      %v924 = vmax.f32 %v918, 0.0
      %v925 = vmax.f32 %v921, 0.0
      %v926 = vpack.c.bf16 %v925, %v924
      %v927 = vld [vmem:[#allocation9] sm:$0xf]
      %v928 = vld [vmem:[#allocation9 + $0x4] sm:$0xf]
      %v929 = vld [vmem:[#allocation9 + $0x8] sm:$0xf]
      %v930 = vld [vmem:[#allocation9 + $0xc] sm:$0xf]
      %v931 = vld [vmem:[#allocation9 + $0x10] sm:$0xf]
      %v932 = vld [vmem:[#allocation9 + $0x14] sm:$0xf]
      %v933 = vld [vmem:[#allocation9 + $0x18] sm:$0xf]
      %v934 = vld [vmem:[#allocation9 + $0x1c] sm:$0xf]
      %v935 = vld [vmem:[#allocation9 + $0x20] sm:$0xf]
      %v936 = vld [vmem:[#allocation9 + $0x24] sm:$0xf]
      %v937 = vld [vmem:[#allocation9 + $0x28] sm:$0xf]
      %v938 = vld [vmem:[#allocation9 + $0x2c] sm:$0xf]
      %v939 = vld [vmem:[#allocation9 + $0x30] sm:$0xf]
      %v940 = vld [vmem:[#allocation9 + $0x34] sm:$0xf]
      %v941 = vld [vmem:[#allocation9 + $0x38] sm:$0xf]
      %v942 = vld [vmem:[#allocation9 + $0x3c] sm:$0xf]
      %v943 = vld [vmem:[%s6] sm:$0x1]
      %v945 = vlaneseq
      %v946 = vshrl.u32 %v945, 7
      %v947 = vsub.s32 0, %v946
      %v948 = vrot.slane %v943, %v947
      %v966 = vunpack.c.l.b16 %v927
      %v967 = vunpack.c.l.b16 %v928
      %v968 = vunpack.c.l.b16 %v929
      %v969 = vunpack.c.l.b16 %v930
      %v970 = vunpack.c.l.b16 %v931
      %v971 = vunpack.c.l.b16 %v932
      %v972 = vunpack.c.l.b16 %v933
      %v973 = vunpack.c.l.b16 %v934
      %v974 = vunpack.c.l.b16 %v935
      %v975 = vunpack.c.l.b16 %v936
      %v976 = vunpack.c.l.b16 %v937
      %v977 = vunpack.c.l.b16 %v938
      %v978 = vunpack.c.l.b16 %v939
      %v979 = vunpack.c.l.b16 %v940
      %v980 = vunpack.c.l.b16 %v941
      %v981 = vunpack.c.l.b16 %v942
      %v982 = vpack.c.b16 %v967, %v966
      %v983 = vpack.c.b16 %v969, %v968
      %v984 = vpack.c.b16 %v971, %v970
      %v985 = vpack.c.b16 %v973, %v972
      %v986 = vpack.c.b16 %v975, %v974
      %v987 = vpack.c.b16 %v977, %v976
      %v988 = vpack.c.b16 %v979, %v978
      %v989 = vpack.c.b16 %v981, %v980
      %998 = vmatprep.subr.bf16.mxu0 0
      %999 = vmatpush1.bf16.msra.mxu0 %v982
      %1000 = vmatprep.subr.bf16.mxu0 0
      %1001 = vmatpush1.bf16.msra.mxu0 %v983
      %1002 = vmatprep.subr.bf16.mxu0 0
      %1003 = vmatpush1.bf16.msra.mxu0 %v984
      %1004 = vmatprep.subr.bf16.mxu0 0
      %1005 = vmatpush1.bf16.msra.mxu0 %v985
      %1006 = vmatprep.subr.bf16.mxu0 0
      %1007 = vmatpush1.bf16.msra.mxu0 %v986
      %1008 = vmatprep.subr.bf16.mxu0 0
      %1009 = vmatpush1.bf16.msra.mxu0 %v987
      %1010 = vmatprep.subr.bf16.mxu0 0
      %1011 = vmatpush1.bf16.msra.mxu0 %v988
      %1012 = vmatprep.subr.bf16.mxu0 0
      %1013 = vmatpush1.bf16.msra.mxu0 %v989
      %1014 = vmatprep.subr.bf16.mxu0 0
      %1015 = vmatpush1.bf16.msra.mxu0 0
      %1016 = vmatprep.subr.bf16.mxu0 0
      %1017 = vmatpush1.bf16.msra.mxu0 0
      %1018 = vmatprep.subr.bf16.mxu0 0
      %1019 = vmatpush1.bf16.msra.mxu0 0
      %1020 = vmatprep.subr.bf16.mxu0 0
      %1021 = vmatpush1.bf16.msra.mxu0 0
      %1022 = vmatprep.subr.bf16.mxu0 0
      %1023 = vmatpush1.bf16.msra.mxu0 0
      %1024 = vmatprep.subr.bf16.mxu0 0
      %1025 = vmatpush1.bf16.msra.mxu0 0
      %1026 = vmatprep.subr.bf16.mxu0 0
      %1027 = vmatpush1.bf16.msra.mxu0 0
      %1028 = vmatprep.subr.bf16.mxu0 0
      %1029 = vmatpush1.bf16.msra.mxu0 0
      %1030 = vmatprep.mubr.bf16.mxu0 0
      %1031 = vmatmul.mubr.bf16.gmra.mrb[0].mxu0 %v926
      %v1032 = vpop.f32.mrb[0].mxu0
      %v1033 = vadd.f32 %v948, %v1032
      %v1034 = vpop.f32.mrb[0].mxu0
      %v1035 = vpop.f32.mrb[0].mxu0
      %v1036 = vadd.f32 %v948, %v1035
      %v1037 = vpop.f32.mrb[0].mxu0
      %1038 = vdwg.mxu0
      %v1039 = vpack.c.bf16 %v1036, %v1033
      %v1041 = vunpack.c.l.b16 %v1039
      %v1042 = vunpack.c.h.b16 %v1039
      %v1043 = vpack.c.b16 %v1041, %v1041
      %v1044 = vpack.c.b16 %v1042, %v1042
      %1047 = vst [vmem:[#allocation11] sm:$0xf] %v1043
      %1048 = vst [vmem:[#allocation11 + $0x4] sm:$0xf] %v1044
    $region53: #{tpu_custom_call.1} parent=1 // pred_fallthru
      _
    // Predicated region
    $region54: #{tpu_custom_call.1} parent=1 // pred_check
      _
    $region55: #{tpu_custom_call.1} parent=1 // pred_check_branch
      %1050 = sbr.rel (0) target = $region57
    $region56: #{tpu_custom_call.1} parent=1 // pred_region
      %s1052 = ssub.s32 128, 128
      %1053 = vsyncadd [#allocation5], %s1052
      %s1054 = sshll.u32 [#allocation11], 4
      %s1055 = int_to_ptr.vmem [resolvable:$true] %s1054
      %1060 = dma.vmem_to_hbm [thread:$0]  %s1055, 128, %s7, [#allocation5], 64, 64, 4
    $region57: #{tpu_custom_call.1} parent=1 // pred_fallthru
      _
    // Predicated region
    $region58: #{tpu_custom_call.1} parent=1 // pred_check
      _
    $region59: #{tpu_custom_call.1} parent=1 // pred_check_branch
      %1062 = sbr.rel (0) target = $region61
    $region60: #{tpu_custom_call.1} parent=1 // pred_region
      %1063 = dma.done [#allocation5], 128
    $region61: #{tpu_custom_call.1} parent=1 // pred_fallthru
      _
    %1064 = vsyncpa [#allocation4], 1
    %1065 = vsyncpa [#allocation7], 1
    %1066 = vsyncpa [#allocation10], 1
    %1067 = vsyncpa [#allocation5], 1

</llo_original>
